<compile_context>
chip_gen: v5e
topology: v5e:2x2
jax: 0.10.0
libtpu: 0.0.40
codegen_flags: <defaults>
</compile_context>

<pallas_src>
import math
from functools import partial

import jax
import jax.numpy as jnp
import numpy as np
from jax import lax
from jax.experimental import pallas as pl
from jax.experimental.pallas import tpu as pltpu

LN_EPS = 1e-5

# Finite "minus infinity": keeps all exp/select arithmetic finite (avoids the
# -inf - -inf = NaN hazard if this kernel is ever reused with padding masks).
MASK_VALUE = -0.7 * float(np.finfo(np.float32).max)

# Elementwise dtype for softmax exp / GELU.  float32 is correct on every TPU
# generation; set to jnp.bfloat16 on v6e/v7x (bf16-capable EUP/VPU) for ~2x
# transcendental throughput.  v5e has no bf16 VPU/EUP -> keep f32 there.
EW_DTYPE = jnp.float32


def _layernorm(x, gamma, beta):
    # Single-pass LayerNorm: E[x] and E[x^2] together, var = E[x^2] - E[x]^2.
    mu = jnp.mean(x, axis=-1, keepdims=True)
    ms = jnp.mean(x * x, axis=-1, keepdims=True)
    var = jnp.maximum(ms - mu * mu, 0.0)
    inv = lax.rsqrt(var + LN_EPS)
    return (x - mu) * inv * gamma + beta


def _gelu_tanh(x):
    # PyTorch nn.GELU(approximate='tanh')
    c = math.sqrt(2.0 / math.pi)
    return 0.5 * x * (1.0 + jnp.tanh(c * (x + 0.044715 * x * x * x)))


# --------------------------------------------------------------------------
# Kernel A: ln_1 + QKV projection, output head-major q/k/v (B, H, T, hd) bf16
# --------------------------------------------------------------------------
def qkv_kernel(x_ref, g1_ref, b1_ref, w_qkv_ref, bqkv_ref,
               q_ref, k_ref, v_ref, *, n_head):
    x = x_ref[0]                                   # (tq, C) f32
    tq, C = x.shape
    hd = C // n_head
    scale = 1.0 / math.sqrt(hd)

    h = _layernorm(x, g1_ref[...], b1_ref[...])
    qkv = jnp.dot(h.astype(jnp.bfloat16), w_qkv_ref[...],
                  preferred_element_type=jnp.float32) + bqkv_ref[...]   # (tq, 3C)

    def heads(m):                                  # (tq, C) -> (H, tq, hd)
        # Head split happens ONCE here (per token tile), so kernel B's hot
        # KV loop needs no relayouts at all.
        return jnp.transpose(m.reshape(tq, n_head, hd), (1, 0, 2))

    # fold 1/sqrt(hd) into q before the bf16 cast
    q_ref[0] = heads(qkv[:, 0 * C:1 * C] * scale).astype(q_ref.dtype)
    k_ref[0] = heads(qkv[:, 1 * C:2 * C]).astype(k_ref.dtype)
    v_ref[0] = heads(qkv[:, 2 * C:3 * C]).astype(v_ref.dtype)


# --------------------------------------------------------------------------
# Kernel B: flash-style causal attention (online softmax over KV tiles)
#           + attention projection + residual + ln_2 + MLP + residual
# --------------------------------------------------------------------------
def attn_mlp_kernel(x_ref, q_ref, k_ref, v_ref,
                    w_ap_ref, bap_ref, g2_ref, b2_ref,
                    w_fc_ref, bfc_ref, w_mp_ref, bmp_ref,
                    o_ref,
                    m_ref, l_ref, acc_ref,
                    *, kv_tile):
    x = x_ref[0]                                   # (tq, C) f32
    tq, C = x.shape
    q = q_ref[0]                                   # (H, tq, hd) bf16, pre-scaled
    tk = kv_tile
    qi = pl.program_id(1)

    # ---- online-softmax accumulators (re-initialized every grid step) ----
    m_ref[...] = jnp.full(m_ref.shape, MASK_VALUE, dtype=jnp.float32)
    l_ref[...] = jnp.zeros(l_ref.shape, dtype=jnp.float32)
    acc_ref[...] = jnp.zeros(acc_ref.shape, dtype=jnp.float32)

    rows = qi * tq + lax.broadcasted_iota(jnp.int32, (tq, tk), 0)

    # Causal tile skipping: KV tiles strictly past the diagonal are fully
    # masked and never visited (cuts attention MXU + exp work ~2x).
    num_kv = qi + 1

    @pl.loop(0, num_kv)
    def _(j):
        start = pl.multiple_of(j * tk, tk)
        kt = k_ref[0, :, pl.ds(start, tk), :]      # (H, tk, hd) bf16, no relayout
        vt = v_ref[0, :, pl.ds(start, tk), :]

        s = jnp.einsum('htd,hsd->hts', q, kt,
                       preferred_element_type=jnp.float32)   # (H, tq, tk) f32
        # Additive causal bias; zero everywhere except on the diagonal tile.
        cols = start + lax.broadcasted_iota(jnp.int32, (tq, tk), 1)
        s = s + jnp.where(rows >= cols, 0.0, MASK_VALUE)[None]

        m_prev = m_ref[...]
        m_new = jnp.maximum(m_prev, jnp.max(s, axis=-1, keepdims=True))
        alpha = jnp.exp(m_prev - m_new)                       # (H, tq, 1) f32
        p = jnp.exp((s - m_new).astype(EW_DTYPE))             # unnormalized probs
        l_ref[...] = alpha * l_ref[...] + jnp.sum(p.astype(jnp.float32),
                                                  axis=-1, keepdims=True)
        acc_ref[...] = alpha * acc_ref[...] + jnp.einsum(
            'hts,hsd->htd', p.astype(jnp.bfloat16), vt,
            preferred_element_type=jnp.float32)
        m_ref[...] = m_new

    # Deferred softmax normalization: one EUP reciprocal on the (H, tq, hd)
    # output instead of dividing the probability tensor.
    yh = acc_ref[...] * pl.reciprocal(l_ref[...], approx=True)
    y = jnp.transpose(yh, (1, 0, 2)).reshape(tq, C)           # merge heads (per tile)

    attn = jnp.dot(y.astype(jnp.bfloat16), w_ap_ref[...],
                   preferred_element_type=jnp.float32) + bap_ref[...]
    x1 = x + attn

    # ---------------- ln_2 + MLP ----------------
    h2 = _layernorm(x1, g2_ref[...], b2_ref[...])
    f = jnp.dot(h2.astype(jnp.bfloat16), w_fc_ref[...],
                preferred_element_type=jnp.float32) + bfc_ref[...]       # (tq, 4C)
    f = _gelu_tanh(f.astype(EW_DTYPE))
    mlp = jnp.dot(f.astype(jnp.bfloat16), w_mp_ref[...],
                  preferred_element_type=jnp.float32) + bmp_ref[...]
    o_ref[0] = (x1 + mlp).astype(o_ref.dtype)


# --------------------------------------------------------------------------
# VMEM / cost helpers
# --------------------------------------------------------------------------
def _vmem_capacity_bytes():
    try:
        info = pltpu.get_tpu_info()
        cap = int(getattr(info, "vmem_capacity_bytes", 0))
        if cap > 0:
            return cap
    except Exception:
        pass
    return 128 << 20          # v5e / v6e default


def _vmem_limit(est_bytes):
    cap = _vmem_capacity_bytes()
    # Leave headroom for Mosaic-internal scratch / pipeline double buffers:
    # ~8 MiB on 64 MiB/TC parts (v7x), ~16 MiB on 128 MiB parts (v5e/v6e).
    headroom = (8 << 20) if cap <= (64 << 20) else (16 << 20)
    return int(min(cap - headroom, max(48 << 20, 2 * int(est_bytes))))


def _qkv_cost(B, T, C):
    flops = 2 * B * T * C * 3 * C
    byts = 4 * B * T * C + 2 * C * 3 * C + 3 * 2 * B * T * C
    return pl.CostEstimate(flops=int(flops), transcendentals=int(B * T),
                           bytes_accessed=int(byts))


def _attn_mlp_cost(B, T, C, n_head):
    hd = C // n_head
    attn = 2 * B * n_head * T * T * hd            # QK^T + P@V with ~0.5 causal
    proj = 2 * B * T * C * (C + 4 * C + 4 * C)
    trans = B * n_head * T * T // 2 + 4 * B * T * C + 2 * B * T
    byts = 2 * 4 * B * T * C + 3 * 2 * B * T * C + 2 * 9 * C * C
    return pl.CostEstimate(flops=int(attn + proj), transcendentals=int(trans),
                           bytes_accessed=int(byts))


# --------------------------------------------------------------------------
# Wrapper
# --------------------------------------------------------------------------
def gpt2_block(x, params, n_head, *, q_tile=256, single_buffer_weights=True):
    B, T, C = x.shape
    hd = C // n_head
    (g1, b1, w_qkv, bqkv, w_ap, bap,
     g2, b2, w_fc, bfc, w_mp, bmp) = params

    # Sequence tile (query == kv tile): >=256 fills the v6e/v7x 256x256 MXU on
    # the attention contractions; clamp to a divisor of T for small tests.
    tq = min(q_tile, T)
    while tq > 1 and T % tq != 0:
        tq //= 2
    assert T % tq == 0
    nq = T // tq

    # bf16 weights for the MXU (activations are cast inside the kernels);
    # LayerNorm params and biases stay f32 (they feed f32 accumulators).
    w_qkv = w_qkv.astype(jnp.bfloat16)
    w_ap = w_ap.astype(jnp.bfloat16)
    w_fc = w_fc.astype(jnp.bfloat16)
    w_mp = w_mp.astype(jnp.bfloat16)
    # TODO(synk): on v7x, if VMEM is still tight at scale, stream w_fc/w_mp
    # K-tiles from HBM (memory_space=pl.ANY + pltpu.emit_pipeline) or quantize
    # the projection weights to fp8 (gated on an accuracy check).

    wkw = {"pipeline_mode": pl.Buffered(1)} if single_buffer_weights else {}
    wbuf = 1 if single_buffer_weights else 2

    def const_spec(shape, weight=False):
        nd = len(shape)
        return pl.BlockSpec(shape, lambda *_: (0,) * nd,
                            **(wkw if weight else {}))

    # -------------------- kernel A: ln_1 + QKV projection --------------------
    qkv_est = (2 * wbuf * C * 3 * C                 # bf16 W_qkv
               + 2 * 2 * 4 * tq * C                 # x blocks (double buffered)
               + 3 * 2 * 2 * 2 * tq * C             # q/k/v out blocks (bf16)
               + 2 * 4 * tq * 3 * C)                # f32 intermediates
    qkv_out = jax.ShapeDtypeStruct((B, n_head, T, hd), jnp.bfloat16)
    qkv_out_spec = pl.BlockSpec((1, n_head, tq, hd), lambda b, i: (b, 0, i, 0))

    q_hm, k_hm, v_hm = pl.pallas_call(
        partial(qkv_kernel, n_head=n_head),
        out_shape=(qkv_out, qkv_out, qkv_out),
        grid_spec=pltpu.PrefetchScalarGridSpec(
            num_scalar_prefetch=0,
            grid=(B, nq),
            in_specs=[
                pl.BlockSpec((1, tq, C), lambda b, i: (b, i, 0)),     # x
                const_spec(g1.shape), const_spec(b1.shape),
                const_spec(w_qkv.shape, weight=True), const_spec(bqkv.shape),
            ],
            out_specs=(qkv_out_spec, qkv_out_spec, qkv_out_spec),
        ),
        compiler_params=pltpu.CompilerParams(
            dimension_semantics=("parallel", "parallel"),
            vmem_limit_bytes=_vmem_limit(qkv_est)),
        cost_estimate=_qkv_cost(B, T, C),
    )(x, g1, b1, w_qkv, bqkv)

    # ------------- kernel B: flash attention + proj + ln_2 + MLP -------------
    attn_est = (2 * wbuf * (C * C + 4 * C * C + 4 * C * C)     # bf16 weights
                + 2 * 2 * 4 * tq * C * 2                       # x in + out blocks
                + 2 * 2 * 2 * n_head * tq * hd                 # q blocks
                + 2 * 2 * 2 * n_head * T * hd * 2              # k + v blocks
                + 4 * (3 * n_head * tq * tq                    # s / p tiles
                       + n_head * tq * hd                      # acc
                       + 2 * tq * 4 * C + 6 * tq * C))         # MLP + misc

    out = pl.pallas_call(
        partial(attn_mlp_kernel, kv_tile=tq),
        out_shape=jax.ShapeDtypeStruct((B, T, C), x.dtype),
        grid_spec=pltpu.PrefetchScalarGridSpec(
            num_scalar_prefetch=0,
            grid=(B, nq),
            in_specs=[
                pl.BlockSpec((1, tq, C), lambda b, i: (b, i, 0)),            # x
                pl.BlockSpec((1, n_head, tq, hd), lambda b, i: (b, 0, i, 0)),  # q
                pl.BlockSpec((1, n_head, T, hd), lambda b, i: (b, 0, 0, 0)),   # k
                pl.BlockSpec((1, n_head, T, hd), lambda b, i: (b, 0, 0, 0)),   # v
                const_spec(w_ap.shape, weight=True), const_spec(bap.shape),
                const_spec(g2.shape), const_spec(b2.shape),
                const_spec(w_fc.shape, weight=True), const_spec(bfc.shape),
                const_spec(w_mp.shape, weight=True), const_spec(bmp.shape),
            ],
            out_specs=pl.BlockSpec((1, tq, C), lambda b, i: (b, i, 0)),
            scratch_shapes=[
                pltpu.VMEM((n_head, tq, 1), jnp.float32),    # m (running max)
                pltpu.VMEM((n_head, tq, 1), jnp.float32),    # l (running denom)
                pltpu.VMEM((n_head, tq, hd), jnp.float32),   # acc
            ],
        ),
        compiler_params=pltpu.CompilerParams(
            dimension_semantics=("parallel", "parallel"),
            vmem_limit_bytes=_vmem_limit(attn_est)),
        cost_estimate=_attn_mlp_cost(B, T, C, n_head),
    )(x, q_hm, k_hm, v_hm, w_ap, bap, g2, b2, w_fc, bfc, w_mp, bmp)
    return out


# ---------------- pure-JAX reference (for correctness check) ----------------
def reference_block(x, params, n_head):
    (g1, b1, w_qkv, bqkv, w_ap, bap,
     g2, b2, w_fc, bfc, w_mp, bmp) = params
    B, T, C = x.shape
    hd = C // n_head

    def ln(z, g, b):
        mu = z.mean(-1, keepdims=True)
        var = ((z - mu) ** 2).mean(-1, keepdims=True)
        return (z - mu) / jnp.sqrt(var + LN_EPS) * g + b

    h = ln(x, g1, b1)
    qkv = h @ w_qkv + bqkv
    q, k, v = jnp.split(qkv, 3, axis=-1)
    q = q.reshape(B, T, n_head, hd).transpose(0, 2, 1, 3)
    k = k.reshape(B, T, n_head, hd).transpose(0, 2, 1, 3)
    v = v.reshape(B, T, n_head, hd).transpose(0, 2, 1, 3)
    s = jnp.einsum("bhqd,bhkd->bhqk", q, k) / math.sqrt(hd)
    mask = jnp.tril(jnp.ones((T, T), bool))
    s = jnp.where(mask, s, -jnp.inf)
    p = jax.nn.softmax(s, axis=-1)
    y = jnp.einsum("bhqk,bhkd->bhqd", p, v).transpose(0, 2, 1, 3).reshape(B, T, C)
    x1 = x + y @ w_ap + bap
    h2 = ln(x1, g2, b2)
    f = h2 @ w_fc + bfc
    cst = math.sqrt(2.0 / math.pi)
    f = 0.5 * f * (1.0 + jnp.tanh(cst * (f + 0.044715 * f ** 3)))
    return x1 + f @ w_mp + bmp


if __name__ == "__main__":
    # Small config consistent with the module: n_embed=32, n_head=4, T=8, B=2.
    # NOTE: do not draw perf conclusions from these toy shapes; benchmark at
    # GPT-2 shapes (T=1024, C=768, n_head=12) where the tiles are lane-dense.
    B, T, C, n_head = 2, 8, 32, 4

    key = jax.random.PRNGKey(0)
    ks = jax.random.split(key, 8)
    std = 0.02
    x = jax.random.normal(ks[0], (B, T, C), jnp.float32)

    g1 = jnp.ones((1, C), jnp.float32)
    b1 = jnp.zeros((1, C), jnp.float32)
    w_qkv = std * jax.random.normal(ks[1], (C, 3 * C), jnp.float32)
    bqkv = std * jax.random.normal(ks[2], (1, 3 * C), jnp.float32)
    w_ap = std * jax.random.normal(ks[3], (C, C), jnp.float32)
    bap = std * jax.random.normal(ks[4], (1, C), jnp.float32)
    g2 = jnp.ones((1, C), jnp.float32)
    b2 = jnp.zeros((1, C), jnp.float32)
    w_fc = std * jax.random.normal(ks[5], (C, 4 * C), jnp.float32)
    bfc = std * jax.random.normal(ks[6], (1, 4 * C), jnp.float32)
    w_mp = std * jax.random.normal(ks[7], (4 * C, C), jnp.float32)
    bmp = jnp.zeros((1, C), jnp.float32)

    params = (g1, b1, w_qkv, bqkv, w_ap, bap, g2, b2, w_fc, bfc, w_mp, bmp)
    ref = reference_block(x, params, n_head)

    try:
        out = gpt2_block(x, params, n_head, single_buffer_weights=True)
        out = jax.block_until_ready(out)
    except Exception:
        # pl.Buffered(1) single-buffering of the constant weight blocks is a
        # pure VMEM optimization; fall back to default double buffering if the
        # installed JAX/Mosaic rejects buffer_count=1.  The numerics check is
        # OUTSIDE this try, so real accuracy failures are never masked.
        out = gpt2_block(x, params, n_head, single_buffer_weights=False)
        out = jax.block_until_ready(out)

    # bf16 matmul operands (f32 accumulation), bf16 probabilities before P@V
    # and the approx softmax reciprocal => loosened tolerance vs the all-f32
    # reference.
    np.testing.assert_allclose(np.asarray(out), np.asarray(ref),
                               rtol=2e-2, atol=2e-2)
    print("KERNEL_OK")
</pallas_src>

<mosaic_0001>
module attributes {stable_mosaic.version = 11 : i64} {
  func.func @qkv_kernel(%arg0: i32, %arg1: i32, %arg2: memref<1x8x32xf32, #tpu.memory_space<vmem>>, %arg3: memref<1x32xf32, #tpu.memory_space<vmem>>, %arg4: memref<1x32xf32, #tpu.memory_space<vmem>>, %arg5: memref<32x96xbf16, #tpu.memory_space<vmem>>, %arg6: memref<1x96xf32, #tpu.memory_space<vmem>>, %arg7: memref<1x4x8x8xbf16, #tpu.memory_space<vmem>>, %arg8: memref<1x4x8x8xbf16, #tpu.memory_space<vmem>>, %arg9: memref<1x4x8x8xbf16, #tpu.memory_space<vmem>>) attributes {dimension_semantics = [#tpu.dimension_semantics<parallel>, #tpu.dimension_semantics<parallel>], iteration_bounds = array<i64: 2, 1>, scalar_prefetch = 0 : i64, scratch_operands = 0 : i64, tpu.core_type = #tpu.core_type<tc>, window_params = [{transform_indices = @transform_0, window_bounds = array<i64: 1, 8, 32>}, {pipeline_mode = #tpu.pipeline_mode<synchronous>, transform_indices = @transform_1, window_bounds = array<i64: 1, 32>}, {pipeline_mode = #tpu.pipeline_mode<synchronous>, transform_indices = @transform_2, window_bounds = array<i64: 1, 32>}, {pipeline_mode = #tpu.pipeline_mode<synchronous>, transform_indices = @transform_3, window_bounds = array<i64: 32, 96>}, {pipeline_mode = #tpu.pipeline_mode<synchronous>, transform_indices = @transform_4, window_bounds = array<i64: 1, 96>}, {transform_indices = @transform_5, window_bounds = array<i64: 1, 4, 8, 8>}, {transform_indices = @transform_6, window_bounds = array<i64: 1, 4, 8, 8>}, {transform_indices = @transform_7, window_bounds = array<i64: 1, 4, 8, 8>}]} {
    %c0 = arith.constant 0 : index
    %c0_0 = arith.constant 0 : index
    %c0_1 = arith.constant 0 : index
    %0 = vector.load %arg2[%c0, %c0_0, %c0_1] : memref<1x8x32xf32, #tpu.memory_space<vmem>>, vector<1x8x32xf32>
    %1 = vector.shape_cast %0 : vector<1x8x32xf32> to vector<8x32xf32>
    %c0_2 = arith.constant 0 : index
    %c0_3 = arith.constant 0 : index
    %2 = vector.load %arg3[%c0_2, %c0_3] : memref<1x32xf32, #tpu.memory_space<vmem>>, vector<1x32xf32>
    %c0_4 = arith.constant 0 : index
    %c0_5 = arith.constant 0 : index
    %3 = vector.load %arg4[%c0_4, %c0_5] : memref<1x32xf32, #tpu.memory_space<vmem>>, vector<1x32xf32>
    %cst = arith.constant dense<0.000000e+00> : vector<8xf32>
    %4 = vector.multi_reduction <add>, %1, %cst [1] : vector<8x32xf32> to vector<8xf32>
    %5 = vector.shape_cast %4 : vector<8xf32> to vector<8x1xf32>
    %cst_6 = arith.constant 3.200000e+01 : f32
    %6 = vector.broadcast %cst_6 : f32 to vector<8x1xf32>
    %7 = arith.divf %5, %6 : vector<8x1xf32>
    %8 = arith.mulf %1, %1 : vector<8x32xf32>
    %cst_7 = arith.constant dense<0.000000e+00> : vector<8xf32>
    %9 = vector.multi_reduction <add>, %8, %cst_7 [1] : vector<8x32xf32> to vector<8xf32>
    %10 = vector.shape_cast %9 : vector<8xf32> to vector<8x1xf32>
    %cst_8 = arith.constant 3.200000e+01 : f32
    %11 = vector.broadcast %cst_8 : f32 to vector<8x1xf32>
    %12 = arith.divf %10, %11 : vector<8x1xf32>
    %13 = arith.mulf %7, %7 : vector<8x1xf32>
    %14 = arith.subf %12, %13 : vector<8x1xf32>
    %cst_9 = arith.constant 0.000000e+00 : f32
    %15 = vector.broadcast %cst_9 : f32 to vector<8x1xf32>
    %16 = arith.maximumf %14, %15 : vector<8x1xf32>
    %cst_10 = arith.constant 9.99999974E-6 : f32
    %17 = vector.broadcast %cst_10 : f32 to vector<8x1xf32>
    %18 = arith.addf %16, %17 : vector<8x1xf32>
    %19 = math.rsqrt %18 : vector<8x1xf32>
    %20 = vector.broadcast %7 : vector<8x1xf32> to vector<8x32xf32>
    %21 = arith.subf %1, %20 : vector<8x32xf32>
    %22 = vector.broadcast %19 : vector<8x1xf32> to vector<8x32xf32>
    %23 = arith.mulf %21, %22 : vector<8x32xf32>
    %24 = vector.broadcast %2 : vector<1x32xf32> to vector<8x32xf32>
    %25 = arith.mulf %23, %24 : vector<8x32xf32>
    %26 = vector.broadcast %3 : vector<1x32xf32> to vector<8x32xf32>
    %27 = arith.addf %25, %26 : vector<8x32xf32>
    %28 = arith.truncf %27 : vector<8x32xf32> to vector<8x32xbf16>
    %c0_11 = arith.constant 0 : index
    %c0_12 = arith.constant 0 : index
    %29 = vector.load %arg5[%c0_11, %c0_12] : memref<32x96xbf16, #tpu.memory_space<vmem>>, vector<32x96xbf16>
    %cst_13 = arith.constant dense<0.000000e+00> : vector<8x96xf32>
    %30 = tpu.matmul %28, %29, %cst_13 {dimension_numbers = #tpu.dot_dimension_numbers<[1], [0], [0], [1], [0, 0, 1, 1], [], []>} : vector<8x32xbf16>, vector<32x96xbf16>, vector<8x96xf32> -> vector<8x96xf32>
    %c0_14 = arith.constant 0 : index
    %c0_15 = arith.constant 0 : index
    %31 = vector.load %arg6[%c0_14, %c0_15] : memref<1x96xf32, #tpu.memory_space<vmem>>, vector<1x96xf32>
    %32 = vector.broadcast %31 : vector<1x96xf32> to vector<8x96xf32>
    %33 = arith.addf %30, %32 : vector<8x96xf32>
    %34 = vector.extract_strided_slice %33 {offsets = [0, 0], sizes = [8, 32], strides = [1, 1]} : vector<8x96xf32> to vector<8x32xf32>
    %cst_16 = arith.constant 0.353553385 : f32
    %35 = vector.broadcast %cst_16 : f32 to vector<8x32xf32>
    %36 = arith.mulf %34, %35 : vector<8x32xf32>
    %37 = vector.shape_cast %36 : vector<8x32xf32> to vector<8x4x8xf32>
    %38 = tpu.transpose %37, [1, 0, 2] : vector<8x4x8xf32> -> vector<4x8x8xf32>
    %39 = arith.truncf %38 : vector<4x8x8xf32> to vector<4x8x8xbf16>
    %c0_17 = arith.constant 0 : index
    %c0_18 = arith.constant 0 : index
    %c0_19 = arith.constant 0 : index
    %c0_20 = arith.constant 0 : index
    %40 = vector.load %arg7[%c0_17, %c0_18, %c0_19, %c0_20] : memref<1x4x8x8xbf16, #tpu.memory_space<vmem>>, vector<1x4x8x8xbf16>
    %41 = vector.shape_cast %40 : vector<1x4x8x8xbf16> to vector<4x8x8xbf16>
    %42 = vector.shape_cast %39 : vector<4x8x8xbf16> to vector<1x4x8x8xbf16>
    tpu.vector_store %arg7[%c0_17, %c0_18, %c0_19, %c0_20], %42 {strides = array<i32>} : memref<1x4x8x8xbf16, #tpu.memory_space<vmem>>, vector<1x4x8x8xbf16>,
    %43 = vector.extract_strided_slice %33 {offsets = [0, 32], sizes = [8, 32], strides = [1, 1]} : vector<8x96xf32> to vector<8x32xf32>
    %44 = vector.shape_cast %43 : vector<8x32xf32> to vector<8x4x8xf32>
    %45 = tpu.transpose %44, [1, 0, 2] : vector<8x4x8xf32> -> vector<4x8x8xf32>
    %46 = arith.truncf %45 : vector<4x8x8xf32> to vector<4x8x8xbf16>
    %c0_21 = arith.constant 0 : index
    %c0_22 = arith.constant 0 : index
    %c0_23 = arith.constant 0 : index
    %c0_24 = arith.constant 0 : index
    %47 = vector.load %arg8[%c0_21, %c0_22, %c0_23, %c0_24] : memref<1x4x8x8xbf16, #tpu.memory_space<vmem>>, vector<1x4x8x8xbf16>
    %48 = vector.shape_cast %47 : vector<1x4x8x8xbf16> to vector<4x8x8xbf16>
    %49 = vector.shape_cast %46 : vector<4x8x8xbf16> to vector<1x4x8x8xbf16>
    tpu.vector_store %arg8[%c0_21, %c0_22, %c0_23, %c0_24], %49 {strides = array<i32>} : memref<1x4x8x8xbf16, #tpu.memory_space<vmem>>, vector<1x4x8x8xbf16>,
    %50 = vector.extract_strided_slice %33 {offsets = [0, 64], sizes = [8, 32], strides = [1, 1]} : vector<8x96xf32> to vector<8x32xf32>
    %51 = vector.shape_cast %50 : vector<8x32xf32> to vector<8x4x8xf32>
    %52 = tpu.transpose %51, [1, 0, 2] : vector<8x4x8xf32> -> vector<4x8x8xf32>
    %53 = arith.truncf %52 : vector<4x8x8xf32> to vector<4x8x8xbf16>
    %c0_25 = arith.constant 0 : index
    %c0_26 = arith.constant 0 : index
    %c0_27 = arith.constant 0 : index
    %c0_28 = arith.constant 0 : index
    %54 = vector.load %arg9[%c0_25, %c0_26, %c0_27, %c0_28] : memref<1x4x8x8xbf16, #tpu.memory_space<vmem>>, vector<1x4x8x8xbf16>
    %55 = vector.shape_cast %54 : vector<1x4x8x8xbf16> to vector<4x8x8xbf16>
    %56 = vector.shape_cast %53 : vector<4x8x8xbf16> to vector<1x4x8x8xbf16>
    tpu.vector_store %arg9[%c0_25, %c0_26, %c0_27, %c0_28], %56 {strides = array<i32>} : memref<1x4x8x8xbf16, #tpu.memory_space<vmem>>, vector<1x4x8x8xbf16>,
    return
  }
  func.func @transform_0(%arg0: i32, %arg1: i32) -> (i32, i32, i32) {
    %c0_i32 = arith.constant 0 : i32
    %c0_i32_0 = arith.constant 0 : i32
    return %arg0, %arg1, %c0_i32 : i32, i32, i32
  }
  func.func @transform_1(%arg0: i32, %arg1: i32) -> (i32, i32) {
    %c0_i32 = arith.constant 0 : i32
    %c0_i32_0 = arith.constant 0 : i32
    %c0_i32_1 = arith.constant 0 : i32
    return %c0_i32, %c0_i32_0 : i32, i32
  }
  func.func @transform_2(%arg0: i32, %arg1: i32) -> (i32, i32) {
    %c0_i32 = arith.constant 0 : i32
    %c0_i32_0 = arith.constant 0 : i32
    %c0_i32_1 = arith.constant 0 : i32
    return %c0_i32, %c0_i32_0 : i32, i32
  }
  func.func @transform_3(%arg0: i32, %arg1: i32) -> (i32, i32) {
    %c0_i32 = arith.constant 0 : i32
    %c0_i32_0 = arith.constant 0 : i32
    %c0_i32_1 = arith.constant 0 : i32
    return %c0_i32, %c0_i32_0 : i32, i32
  }
  func.func @transform_4(%arg0: i32, %arg1: i32) -> (i32, i32) {
    %c0_i32 = arith.constant 0 : i32
    %c0_i32_0 = arith.constant 0 : i32
    %c0_i32_1 = arith.constant 0 : i32
    return %c0_i32, %c0_i32_0 : i32, i32
  }
  func.func @transform_5(%arg0: i32, %arg1: i32) -> (i32, i32, i32, i32) {
    %c0_i32 = arith.constant 0 : i32
    %c0_i32_0 = arith.constant 0 : i32
    %c0_i32_1 = arith.constant 0 : i32
    return %arg0, %c0_i32, %arg1, %c0_i32_0 : i32, i32, i32, i32
  }
  func.func @transform_6(%arg0: i32, %arg1: i32) -> (i32, i32, i32, i32) {
    %c0_i32 = arith.constant 0 : i32
    %c0_i32_0 = arith.constant 0 : i32
    %c0_i32_1 = arith.constant 0 : i32
    return %arg0, %c0_i32, %arg1, %c0_i32_0 : i32, i32, i32, i32
  }
  func.func @transform_7(%arg0: i32, %arg1: i32) -> (i32, i32, i32, i32) {
    %c0_i32 = arith.constant 0 : i32
    %c0_i32_0 = arith.constant 0 : i32
    %c0_i32_1 = arith.constant 0 : i32
    return %arg0, %c0_i32, %arg1, %c0_i32_0 : i32, i32, i32, i32
  }
}

module attributes {stable_mosaic.version = 11 : i64} {
  func.func @qkv_kernel(%arg0: i32, %arg1: i32, %arg2: memref<1x8x32xf32, #tpu.memory_space<vmem>>, %arg3: memref<1x32xf32, #tpu.memory_space<vmem>>, %arg4: memref<1x32xf32, #tpu.memory_space<vmem>>, %arg5: memref<32x96xbf16, #tpu.memory_space<vmem>>, %arg6: memref<1x96xf32, #tpu.memory_space<vmem>>, %arg7: memref<1x4x8x8xbf16, #tpu.memory_space<vmem>>, %arg8: memref<1x4x8x8xbf16, #tpu.memory_space<vmem>>, %arg9: memref<1x4x8x8xbf16, #tpu.memory_space<vmem>>) attributes {dimension_semantics = [#tpu.dimension_semantics<parallel>, #tpu.dimension_semantics<parallel>], iteration_bounds = array<i64: 2, 1>, scalar_prefetch = 0 : i64, scratch_operands = 0 : i64, tpu.core_type = #tpu.core_type<tc>, window_params = [{transform_indices = @transform_0, window_bounds = array<i64: 1, 8, 32>}, {pipeline_mode = #tpu.pipeline_mode<synchronous>, transform_indices = @transform_1, window_bounds = array<i64: 1, 32>}, {pipeline_mode = #tpu.pipeline_mode<synchronous>, transform_indices = @transform_2, window_bounds = array<i64: 1, 32>}, {pipeline_mode = #tpu.pipeline_mode<synchronous>, transform_indices = @transform_3, window_bounds = array<i64: 32, 96>}, {pipeline_mode = #tpu.pipeline_mode<synchronous>, transform_indices = @transform_4, window_bounds = array<i64: 1, 96>}, {transform_indices = @transform_5, window_bounds = array<i64: 1, 4, 8, 8>}, {transform_indices = @transform_6, window_bounds = array<i64: 1, 4, 8, 8>}, {transform_indices = @transform_7, window_bounds = array<i64: 1, 4, 8, 8>}]} {
    %c0 = arith.constant 0 : index
    %c0_0 = arith.constant 0 : index
    %c0_1 = arith.constant 0 : index
    %0 = vector.load %arg2[%c0, %c0_0, %c0_1] : memref<1x8x32xf32, #tpu.memory_space<vmem>>, vector<1x8x32xf32>
    %1 = vector.shape_cast %0 : vector<1x8x32xf32> to vector<8x32xf32>
    %c0_2 = arith.constant 0 : index
    %c0_3 = arith.constant 0 : index
    %2 = vector.load %arg3[%c0_2, %c0_3] : memref<1x32xf32, #tpu.memory_space<vmem>>, vector<1x32xf32>
    %c0_4 = arith.constant 0 : index
    %c0_5 = arith.constant 0 : index
    %3 = vector.load %arg4[%c0_4, %c0_5] : memref<1x32xf32, #tpu.memory_space<vmem>>, vector<1x32xf32>
    %cst = arith.constant dense<0.000000e+00> : vector<8xf32>
    %4 = vector.multi_reduction <add>, %1, %cst [1] : vector<8x32xf32> to vector<8xf32>
    %5 = vector.shape_cast %4 : vector<8xf32> to vector<8x1xf32>
    %cst_6 = arith.constant 3.200000e+01 : f32
    %6 = vector.broadcast %cst_6 : f32 to vector<8x1xf32>
    %7 = arith.divf %5, %6 : vector<8x1xf32>
    %8 = arith.mulf %1, %1 : vector<8x32xf32>
    %cst_7 = arith.constant dense<0.000000e+00> : vector<8xf32>
    %9 = vector.multi_reduction <add>, %8, %cst_7 [1] : vector<8x32xf32> to vector<8xf32>
    %10 = vector.shape_cast %9 : vector<8xf32> to vector<8x1xf32>
    %cst_8 = arith.constant 3.200000e+01 : f32
    %11 = vector.broadcast %cst_8 : f32 to vector<8x1xf32>
    %12 = arith.divf %10, %11 : vector<8x1xf32>
    %13 = arith.mulf %7, %7 : vector<8x1xf32>
    %14 = arith.subf %12, %13 : vector<8x1xf32>
    %cst_9 = arith.constant 0.000000e+00 : f32
    %15 = vector.broadcast %cst_9 : f32 to vector<8x1xf32>
    %16 = arith.maximumf %14, %15 : vector<8x1xf32>
    %cst_10 = arith.constant 9.99999974E-6 : f32
    %17 = vector.broadcast %cst_10 : f32 to vector<8x1xf32>
    %18 = arith.addf %16, %17 : vector<8x1xf32>
    %19 = math.rsqrt %18 : vector<8x1xf32>
    %20 = vector.broadcast %7 : vector<8x1xf32> to vector<8x32xf32>
    %21 = arith.subf %1, %20 : vector<8x32xf32>
    %22 = vector.broadcast %19 : vector<8x1xf32> to vector<8x32xf32>
    %23 = arith.mulf %21, %22 : vector<8x32xf32>
    %24 = vector.broadcast %2 : vector<1x32xf32> to vector<8x32xf32>
    %25 = arith.mulf %23, %24 : vector<8x32xf32>
    %26 = vector.broadcast %3 : vector<1x32xf32> to vector<8x32xf32>
    %27 = arith.addf %25, %26 : vector<8x32xf32>
    %28 = arith.truncf %27 : vector<8x32xf32> to vector<8x32xbf16>
    %c0_11 = arith.constant 0 : index
    %c0_12 = arith.constant 0 : index
    %29 = vector.load %arg5[%c0_11, %c0_12] : memref<32x96xbf16, #tpu.memory_space<vmem>>, vector<32x96xbf16>
    %cst_13 = arith.constant dense<0.000000e+00> : vector<8x96xf32>
    %30 = tpu.matmul %28, %29, %cst_13 {dimension_numbers = #tpu.dot_dimension_numbers<[1], [0], [0], [1], [0, 0, 1, 1], [], []>} : vector<8x32xbf16>, vector<32x96xbf16>, vector<8x96xf32> -> vector<8x96xf32>
    %c0_14 = arith.constant 0 : index
    %c0_15 = arith.constant 0 : index
    %31 = vector.load %arg6[%c0_14, %c0_15] : memref<1x96xf32, #tpu.memory_space<vmem>>, vector<1x96xf32>
    %32 = vector.broadcast %31 : vector<1x96xf32> to vector<8x96xf32>
    %33 = arith.addf %30, %32 : vector<8x96xf32>
    %34 = vector.extract_strided_slice %33 {offsets = [0, 0], sizes = [8, 32], strides = [1, 1]} : vector<8x96xf32> to vector<8x32xf32>
    %cst_16 = arith.constant 0.353553385 : f32
    %35 = vector.broadcast %cst_16 : f32 to vector<8x32xf32>
    %36 = arith.mulf %34, %35 : vector<8x32xf32>
    %37 = vector.shape_cast %36 : vector<8x32xf32> to vector<8x4x8xf32>
    %38 = tpu.transpose %37, [1, 0, 2] : vector<8x4x8xf32> -> vector<4x8x8xf32>
    %39 = arith.truncf %38 : vector<4x8x8xf32> to vector<4x8x8xbf16>
    %c0_17 = arith.constant 0 : index
    %c0_18 = arith.constant 0 : index
    %c0_19 = arith.constant 0 : index
    %c0_20 = arith.constant 0 : index
    %40 = vector.load %arg7[%c0_17, %c0_18, %c0_19, %c0_20] : memref<1x4x8x8xbf16, #tpu.memory_space<vmem>>, vector<1x4x8x8xbf16>
    %41 = vector.shape_cast %40 : vector<1x4x8x8xbf16> to vector<4x8x8xbf16>
    %42 = vector.shape_cast %39 : vector<4x8x8xbf16> to vector<1x4x8x8xbf16>
    tpu.vector_store %arg7[%c0_17, %c0_18, %c0_19, %c0_20], %42 {strides = array<i32>} : memref<1x4x8x8xbf16, #tpu.memory_space<vmem>>, vector<1x4x8x8xbf16>,
    %43 = vector.extract_strided_slice %33 {offsets = [0, 32], sizes = [8, 32], strides = [1, 1]} : vector<8x96xf32> to vector<8x32xf32>
    %44 = vector.shape_cast %43 : vector<8x32xf32> to vector<8x4x8xf32>
    %45 = tpu.transpose %44, [1, 0, 2] : vector<8x4x8xf32> -> vector<4x8x8xf32>
    %46 = arith.truncf %45 : vector<4x8x8xf32> to vector<4x8x8xbf16>
    %c0_21 = arith.constant 0 : index
    %c0_22 = arith.constant 0 : index
    %c0_23 = arith.constant 0 : index
    %c0_24 = arith.constant 0 : index
    %47 = vector.load %arg8[%c0_21, %c0_22, %c0_23, %c0_24] : memref<1x4x8x8xbf16, #tpu.memory_space<vmem>>, vector<1x4x8x8xbf16>
    %48 = vector.shape_cast %47 : vector<1x4x8x8xbf16> to vector<4x8x8xbf16>
    %49 = vector.shape_cast %46 : vector<4x8x8xbf16> to vector<1x4x8x8xbf16>
    tpu.vector_store %arg8[%c0_21, %c0_22, %c0_23, %c0_24], %49 {strides = array<i32>} : memref<1x4x8x8xbf16, #tpu.memory_space<vmem>>, vector<1x4x8x8xbf16>,
    %50 = vector.extract_strided_slice %33 {offsets = [0, 64], sizes = [8, 32], strides = [1, 1]} : vector<8x96xf32> to vector<8x32xf32>
    %51 = vector.shape_cast %50 : vector<8x32xf32> to vector<8x4x8xf32>
    %52 = tpu.transpose %51, [1, 0, 2] : vector<8x4x8xf32> -> vector<4x8x8xf32>
    %53 = arith.truncf %52 : vector<4x8x8xf32> to vector<4x8x8xbf16>
    %c0_25 = arith.constant 0 : index
    %c0_26 = arith.constant 0 : index
    %c0_27 = arith.constant 0 : index
    %c0_28 = arith.constant 0 : index
    %54 = vector.load %arg9[%c0_25, %c0_26, %c0_27, %c0_28] : memref<1x4x8x8xbf16, #tpu.memory_space<vmem>>, vector<1x4x8x8xbf16>
    %55 = vector.shape_cast %54 : vector<1x4x8x8xbf16> to vector<4x8x8xbf16>
    %56 = vector.shape_cast %53 : vector<4x8x8xbf16> to vector<1x4x8x8xbf16>
    tpu.vector_store %arg9[%c0_25, %c0_26, %c0_27, %c0_28], %56 {strides = array<i32>} : memref<1x4x8x8xbf16, #tpu.memory_space<vmem>>, vector<1x4x8x8xbf16>,
    return
  }
  func.func @transform_0(%arg0: i32, %arg1: i32) -> (i32, i32, i32) {
    %c0_i32 = arith.constant 0 : i32
    %c0_i32_0 = arith.constant 0 : i32
    return %arg0, %arg1, %c0_i32 : i32, i32, i32
  }
  func.func @transform_1(%arg0: i32, %arg1: i32) -> (i32, i32) {
    %c0_i32 = arith.constant 0 : i32
    %c0_i32_0 = arith.constant 0 : i32
    %c0_i32_1 = arith.constant 0 : i32
    return %c0_i32, %c0_i32_0 : i32, i32
  }
  func.func @transform_2(%arg0: i32, %arg1: i32) -> (i32, i32) {
    %c0_i32 = arith.constant 0 : i32
    %c0_i32_0 = arith.constant 0 : i32
    %c0_i32_1 = arith.constant 0 : i32
    return %c0_i32, %c0_i32_0 : i32, i32
  }
  func.func @transform_3(%arg0: i32, %arg1: i32) -> (i32, i32) {
    %c0_i32 = arith.constant 0 : i32
    %c0_i32_0 = arith.constant 0 : i32
    %c0_i32_1 = arith.constant 0 : i32
    return %c0_i32, %c0_i32_0 : i32, i32
  }
  func.func @transform_4(%arg0: i32, %arg1: i32) -> (i32, i32) {
    %c0_i32 = arith.constant 0 : i32
    %c0_i32_0 = arith.constant 0 : i32
    %c0_i32_1 = arith.constant 0 : i32
    return %c0_i32, %c0_i32_0 : i32, i32
  }
  func.func @transform_5(%arg0: i32, %arg1: i32) -> (i32, i32, i32, i32) {
    %c0_i32 = arith.constant 0 : i32
    %c0_i32_0 = arith.constant 0 : i32
    %c0_i32_1 = arith.constant 0 : i32
    return %arg0, %c0_i32, %arg1, %c0_i32_0 : i32, i32, i32, i32
  }
  func.func @transform_6(%arg0: i32, %arg1: i32) -> (i32, i32, i32, i32) {
    %c0_i32 = arith.constant 0 : i32
    %c0_i32_0 = arith.constant 0 : i32
    %c0_i32_1 = arith.constant 0 : i32
    return %arg0, %c0_i32, %arg1, %c0_i32_0 : i32, i32, i32, i32
  }
  func.func @transform_7(%arg0: i32, %arg1: i32) -> (i32, i32, i32, i32) {
    %c0_i32 = arith.constant 0 : i32
    %c0_i32_0 = arith.constant 0 : i32
    %c0_i32_1 = arith.constant 0 : i32
    return %arg0, %c0_i32, %arg1, %c0_i32_0 : i32, i32, i32, i32
  }
}

</mosaic_0001>

<llo_original>
// kernel: tpu_custom_call.1
$region0: #{tpu_custom_call.1}
  #allocation0 [shape = 'u32[]', space=smem, size = 0x4, offset = 0x4, fixed_abs, tag = 'smem constant byte address 0x4 - core index']
  #allocation1 [shape = 'u32[72,128]{1,0:T(1,128)}', space=vmem, size = 0x9000, scoped, tag = 'internal scratch']
  %s0 = inlined_call_operand.hbm [shape: f32[2,8,32], index: 0, kind: input, shape index: {}]
  %s1 = inlined_call_operand.hbm [shape: f32[1,32], index: 1, kind: input, shape index: {}]
  %s2 = inlined_call_operand.vmem [shape: f32[1,32], index: 2, kind: input, shape index: {}]
  %s3 = inlined_call_operand.hbm [shape: bf16[32,96], index: 3, kind: input, shape index: {}]
  %s4 = inlined_call_operand.vmem [shape: f32[1,96], index: 4, kind: input, shape index: {}]
  %s5 = inlined_call_operand.hbm [shape: bf16[2,4,8,8], index: 5, kind: output, shape index: {0}]
  %s6 = inlined_call_operand.hbm [shape: bf16[2,4,8,8], index: 6, kind: output, shape index: {1}]
  %s7 = inlined_call_operand.hbm [shape: bf16[2,4,8,8], index: 7, kind: output, shape index: {2}]
  %8 = xla_tuple %s5, %s6, %s7
  %s9 = sld [smem:[#allocation0]]
  $region81: #{tpu_custom_call.1} parent=0
    _
  %s11 = ssub.s32 1, %s9
  %s12 = scalar_select 0, %s11, %s9
  $region1: #{tpu_custom_call.1} parent=0
    #allocation2 [shape = 'u8[8192]{0}', space=vmem, size = 0x2000, scoped, tag = 'input window, operand 0']
    #allocation3 [shape = 's32[2]{0}', space=sflag, size = 0x8, scoped, tag = 'scoped memory for tpu_custom_call.1']
    #allocation4 [shape = 's32[2]{0}', space=sflag, size = 0x8, scoped, tag = 'scoped memory for tpu_custom_call.1']
    #allocation5 [shape = 'u8[512]{0}', space=vmem, size = 0x400, scoped, tag = 'input window, operand 1, single buffered']
    #allocation6 [shape = 's32[1]{0}', space=sflag, size = 0x4, scoped, tag = 'scoped memory for tpu_custom_call.1']
    #allocation7 [shape = 'u8[8192]{0}', space=vmem, size = 0x2000, scoped, tag = 'input window, operand 3, single buffered']
    #allocation8 [shape = 'u8[16384]{0}', space=vmem, size = 0x4000, scoped, tag = 'output window, operand 0']
    #allocation9 [shape = 'u8[16384]{0}', space=vmem, size = 0x4000, scoped, tag = 'output window, operand 1']
    #allocation10 [shape = 's32[2]{0}', space=sflag, size = 0x8, scoped, tag = 'scoped memory for tpu_custom_call.1']
    #allocation11 [shape = 'u8[16384]{0}', space=vmem, size = 0x4000, scoped, tag = 'output window, operand 2']
    %13 = vsyncpa [#allocation3], 0
    %s14 = scalar_lea.sflag [#allocation3], 1
    %15 = vsyncpa %s14, 0
    %16 = vsyncpa [#allocation6], 0
    %17 = vsyncpa [#allocation4], 0
    %s18 = scalar_lea.sflag [#allocation4], 1
    %19 = vsyncpa %s18, 0
    %20 = vsyncpa [#allocation10], 0
    %s21 = scalar_lea.sflag [#allocation10], 1
    %22 = vsyncpa %s21, 0
    loop: start=0, step=1, limit=4
    $region2: #{tpu_custom_call.1} parent=1 // loop_pre_header
      _
    $region3: #{tpu_custom_call.1} parent=1 // loop_header
      %s24 = sphi 0, %s28
      %p25 = scmp.ge.s32.totalorder %s24, 4
      %s31 = sphi 0, %s43
      %s32 = sphi 0, %s39
      %s33 = sphi 0, %s31
      %s34 = sphi 0, %s32
      %s35 = sphi 0, %s33
      %s36 = sphi 0, %s34
      %s48 = sphi 0, %s50
      %s51 = sphi 0, %s48
      %s52 = sphi 0, %s51
      %s68 = sphi 0, %s52
      %s72 = sphi 0, %s72
      %s74 = sphi 0, %s72
      %s75 = sphi 0, %s74
      %s89 = sphi 0, %s75
      %s93 = sphi 0, %s93
      %s95 = sphi 0, %s93
      %s96 = sphi 0, %s95
      %s110 = sphi 0, %s96
      %s114 = sphi 0, %s114
      %s116 = sphi 0, %s114
      %s117 = sphi 0, %s116
      %s131 = sphi 0, %s117
      %s135 = sphi 0, %s135
      %s137 = sphi 0, %s135
      %s138 = sphi 0, %s137
      %s152 = sphi 0, %s138
      %s160 = sphi 0, %s162
      %s163 = sphi 0, %s160
      %s164 = sphi 0, %s163
      %s180 = sphi 0, %s164
      %s188 = sphi 0, %s190
      %s191 = sphi 0, %s188
      %s192 = sphi 0, %s191
      %s208 = sphi 0, %s192
      %s216 = sphi 0, %s218
      %s219 = sphi 0, %s216
      %s220 = sphi 0, %s219
      %s236 = sphi 0, %s220
    $region4: #{tpu_custom_call.1} parent=1 // loop_header_branch
      %27 = sbr.rel (%p25) target = $region8
    $region5: #{tpu_custom_call.1} parent=1 // loop_body
      %s29 = ssub.s32 %s24, 1
      %s30 = ssub.s32 %s24, 2
      %s37 = sadd.s32 1, %s32
      %p38 = scmp.ge.s32.totalorder %s37, 1
      %s39 = scalar_select %p38, 0, %s37
      %s40 = sadd.s32 1, %s31
      %s41 = scalar_select %p38, %s40, %s31
      %p42 = scmp.ge.s32.totalorder %s41, 2
      %s43 = scalar_select %p42, 0, %s41
      %s44 = ssub.s32 %s31, %s43
      %s45 = ssub.s32 %s32, %s39
      %s46 = sor.u32 %s44, %s45
      %p47 = scmp.eq.s32.totalorder %s46, 0
      %s49 = sadd.s32 %s48, 1
      %s50 = scalar_select %p47, %s48, %s49
      %p53 = pneg %p47
      %p54 = scmp.eq.s32.totalorder %s24, 1
      %p55 = por %p53, %p54
      %p56 = scmp.ne.s32.totalorder %s48, %s51
      %p57 = scmp.eq.s32.totalorder %s24, 0
      %p58 = por %p56, %p57
      %p59 = scmp.ne.s32.totalorder %s48, %s51
      %p60 = scmp.eq.s32.totalorder %s29, 1
      %p61 = por %p59, %p60
      %p62 = scmp.ne.s32.totalorder %s51, %s52
      %p63 = scmp.eq.s32.totalorder %s29, 0
      %p64 = por %p62, %p63
      %p65 = scmp.ne.s32.totalorder %s51, %s52
      %p66 = scmp.eq.s32.totalorder %s30, 1
      %p67 = por %p65, %p66
      %p69 = scmp.ne.s32.totalorder %s52, %s68
      %p70 = scmp.eq.s32.totalorder %s30, 0
      %p71 = por %p69, %p70
      %s73 = sadd.s32 %s72, 1
      %p76 = scmp.eq.s32.totalorder %s24, 1
      %p77 = scmp.ne.s32.totalorder %s72, %s74
      %p78 = scmp.eq.s32.totalorder %s24, 0
      %p79 = por %p77, %p78
      %p80 = scmp.ne.s32.totalorder %s72, %s74
      %p81 = scmp.eq.s32.totalorder %s29, 1
      %p82 = por %p80, %p81
      %p83 = scmp.ne.s32.totalorder %s74, %s75
      %p84 = scmp.eq.s32.totalorder %s29, 0
      %p85 = por %p83, %p84
      %p86 = scmp.ne.s32.totalorder %s74, %s75
      %p87 = scmp.eq.s32.totalorder %s30, 1
      %p88 = por %p86, %p87
      %p90 = scmp.ne.s32.totalorder %s75, %s89
      %p91 = scmp.eq.s32.totalorder %s30, 0
      %p92 = por %p90, %p91
      %s94 = sadd.s32 %s93, 1
      %p97 = scmp.eq.s32.totalorder %s24, 1
      %p98 = scmp.ne.s32.totalorder %s93, %s95
      %p99 = scmp.eq.s32.totalorder %s24, 0
      %p100 = por %p98, %p99
      %p101 = scmp.ne.s32.totalorder %s93, %s95
      %p102 = scmp.eq.s32.totalorder %s29, 1
      %p103 = por %p101, %p102
      %p104 = scmp.ne.s32.totalorder %s95, %s96
      %p105 = scmp.eq.s32.totalorder %s29, 0
      %p106 = por %p104, %p105
      %p107 = scmp.ne.s32.totalorder %s95, %s96
      %p108 = scmp.eq.s32.totalorder %s30, 1
      %p109 = por %p107, %p108
      %p111 = scmp.ne.s32.totalorder %s96, %s110
      %p112 = scmp.eq.s32.totalorder %s30, 0
      %p113 = por %p111, %p112
      %s115 = sadd.s32 %s114, 1
      %p118 = scmp.eq.s32.totalorder %s24, 1
      %p119 = scmp.ne.s32.totalorder %s114, %s116
      %p120 = scmp.eq.s32.totalorder %s24, 0
      %p121 = por %p119, %p120
      %p122 = scmp.ne.s32.totalorder %s114, %s116
      %p123 = scmp.eq.s32.totalorder %s29, 1
      %p124 = por %p122, %p123
      %p125 = scmp.ne.s32.totalorder %s116, %s117
      %p126 = scmp.eq.s32.totalorder %s29, 0
      %p127 = por %p125, %p126
      %p128 = scmp.ne.s32.totalorder %s116, %s117
      %p129 = scmp.eq.s32.totalorder %s30, 1
      %p130 = por %p128, %p129
      %p132 = scmp.ne.s32.totalorder %s117, %s131
      %p133 = scmp.eq.s32.totalorder %s30, 0
      %p134 = por %p132, %p133
      %s136 = sadd.s32 %s135, 1
      %p139 = scmp.eq.s32.totalorder %s24, 1
      %p140 = scmp.ne.s32.totalorder %s135, %s137
      %p141 = scmp.eq.s32.totalorder %s24, 0
      %p142 = por %p140, %p141
      %p143 = scmp.ne.s32.totalorder %s135, %s137
      %p144 = scmp.eq.s32.totalorder %s29, 1
      %p145 = por %p143, %p144
      %p146 = scmp.ne.s32.totalorder %s137, %s138
      %p147 = scmp.eq.s32.totalorder %s29, 0
      %p148 = por %p146, %p147
      %p149 = scmp.ne.s32.totalorder %s137, %s138
      %p150 = scmp.eq.s32.totalorder %s30, 1
      %p151 = por %p149, %p150
      %p153 = scmp.ne.s32.totalorder %s138, %s152
      %p154 = scmp.eq.s32.totalorder %s30, 0
      %p155 = por %p153, %p154
      %s156 = ssub.s32 %s31, %s43
      %s157 = ssub.s32 %s32, %s39
      %s158 = sor.u32 %s156, %s157
      %p159 = scmp.eq.s32.totalorder %s158, 0
      %s161 = sadd.s32 %s160, 1
      %s162 = scalar_select %p159, %s160, %s161
      %p165 = pneg %p159
      %p166 = scmp.eq.s32.totalorder %s24, 1
      %p167 = por %p165, %p166
      %p168 = scmp.ne.s32.totalorder %s160, %s163
      %p169 = scmp.eq.s32.totalorder %s24, 0
      %p170 = por %p168, %p169
      %p171 = scmp.ne.s32.totalorder %s160, %s163
      %p172 = scmp.eq.s32.totalorder %s29, 1
      %p173 = por %p171, %p172
      %p174 = scmp.ne.s32.totalorder %s163, %s164
      %p175 = scmp.eq.s32.totalorder %s29, 0
      %p176 = por %p174, %p175
      %p177 = scmp.ne.s32.totalorder %s163, %s164
      %p178 = scmp.eq.s32.totalorder %s30, 1
      %p179 = por %p177, %p178
      %p181 = scmp.ne.s32.totalorder %s164, %s180
      %p182 = scmp.eq.s32.totalorder %s30, 0
      %p183 = por %p181, %p182
      %s184 = ssub.s32 %s31, %s43
      %s185 = ssub.s32 %s32, %s39
      %s186 = sor.u32 %s184, %s185
      %p187 = scmp.eq.s32.totalorder %s186, 0
      %s189 = sadd.s32 %s188, 1
      %s190 = scalar_select %p187, %s188, %s189
      %p193 = pneg %p187
      %p194 = scmp.eq.s32.totalorder %s24, 1
      %p195 = por %p193, %p194
      %p196 = scmp.ne.s32.totalorder %s188, %s191
      %p197 = scmp.eq.s32.totalorder %s24, 0
      %p198 = por %p196, %p197
      %p199 = scmp.ne.s32.totalorder %s188, %s191
      %p200 = scmp.eq.s32.totalorder %s29, 1
      %p201 = por %p199, %p200
      %p202 = scmp.ne.s32.totalorder %s191, %s192
      %p203 = scmp.eq.s32.totalorder %s29, 0
      %p204 = por %p202, %p203
      %p205 = scmp.ne.s32.totalorder %s191, %s192
      %p206 = scmp.eq.s32.totalorder %s30, 1
      %p207 = por %p205, %p206
      %p209 = scmp.ne.s32.totalorder %s192, %s208
      %p210 = scmp.eq.s32.totalorder %s30, 0
      %p211 = por %p209, %p210
      %s212 = ssub.s32 %s31, %s43
      %s213 = ssub.s32 %s32, %s39
      %s214 = sor.u32 %s212, %s213
      %p215 = scmp.eq.s32.totalorder %s214, 0
      %s217 = sadd.s32 %s216, 1
      %s218 = scalar_select %p215, %s216, %s217
      %p221 = pneg %p215
      %p222 = scmp.eq.s32.totalorder %s24, 1
      %p223 = por %p221, %p222
      %p224 = scmp.ne.s32.totalorder %s216, %s219
      %p225 = scmp.eq.s32.totalorder %s24, 0
      %p226 = por %p224, %p225
      %p227 = scmp.ne.s32.totalorder %s216, %s219
      %p228 = scmp.eq.s32.totalorder %s29, 1
      %p229 = por %p227, %p228
      %p230 = scmp.ne.s32.totalorder %s219, %s220
      %p231 = scmp.eq.s32.totalorder %s29, 0
      %p232 = por %p230, %p231
      %p233 = scmp.ne.s32.totalorder %s219, %s220
      %p234 = scmp.eq.s32.totalorder %s30, 1
      %p235 = por %p233, %p234
      %p237 = scmp.ne.s32.totalorder %s220, %s236
      %p238 = scmp.eq.s32.totalorder %s30, 0
      %p239 = por %p237, %p238
      %p240 = scmp.le.s32.totalorder 1, %s24
      %p241 = scmp.lt.s32.totalorder %s24, 3
      %p242 = pnand %p240, %p241
      %p243 = pneg %p242
      // Predicated region
      $region9: #{tpu_custom_call.1} parent=5 // pred_check
        _
      $region10: #{tpu_custom_call.1} parent=5 // pred_check_branch
        %245 = sbr.rel (%p242) target = $region12
      $region11: #{tpu_custom_call.1} parent=5 // pred_region
        %s246 = ssub.s32 %s24, 1
        // Predicated region
        $region13: #{tpu_custom_call.1} parent=11 // pred_check
          %p247 = pneg %p85
        $region14: #{tpu_custom_call.1} parent=11 // pred_check_branch
          %249 = sbr.rel (%p247) target = $region16
        $region15: #{tpu_custom_call.1} parent=11 // pred_region
          %251 = vsyncadd [#allocation6], 0
          %s253 = sshll.u32 %s1, 4
          %s254 = int_to_ptr.hbm [resolvable:$true] %s253
          %s255 = sshll.u32 [#allocation5], 4
          %s256 = int_to_ptr.vmem [resolvable:$true] %s255
          %258 = dma.hbm_to_vmem [thread:$0]  %s254, 16, %s256, [#allocation6]
        $region16: #{tpu_custom_call.1} parent=11 // pred_fallthru
          _
        // Predicated region
        $region17: #{tpu_custom_call.1} parent=11 // pred_check
          %p259 = pneg %p106
        $region18: #{tpu_custom_call.1} parent=11 // pred_check_branch
          %261 = sbr.rel (%p259) target = $region20
        $region19: #{tpu_custom_call.1} parent=11 // pred_region
          _
        $region20: #{tpu_custom_call.1} parent=11 // pred_fallthru
          _
        // Predicated region
        $region21: #{tpu_custom_call.1} parent=11 // pred_check
          %p262 = pneg %p127
        $region22: #{tpu_custom_call.1} parent=11 // pred_check_branch
          %264 = sbr.rel (%p262) target = $region24
        $region23: #{tpu_custom_call.1} parent=11 // pred_region
          %266 = vsyncadd [#allocation6], 0
          %s267 = sshll.u32 %s3, 4
          %s268 = int_to_ptr.hbm [resolvable:$true] %s267
          %s269 = sshll.u32 [#allocation7], 4
          %s270 = int_to_ptr.vmem [resolvable:$true] %s269
          %275 = dma.hbm_to_vmem [thread:$0]  %s268, 256, %s270, [#allocation6], 64, 64, 4
        $region24: #{tpu_custom_call.1} parent=11 // pred_fallthru
          _
        // Predicated region
        $region25: #{tpu_custom_call.1} parent=11 // pred_check
          %p276 = pneg %p148
        $region26: #{tpu_custom_call.1} parent=11 // pred_check_branch
          %278 = sbr.rel (%p276) target = $region28
        $region27: #{tpu_custom_call.1} parent=11 // pred_region
          _
        $region28: #{tpu_custom_call.1} parent=11 // pred_fallthru
          _
      $region12: #{tpu_custom_call.1} parent=5 // pred_fallthru
        _
      %p279 = scmp.lt.s32.totalorder %s24, 2
      // Predicated region
      $region29: #{tpu_custom_call.1} parent=5 // pred_check
        %p280 = pneg %p279
      $region30: #{tpu_custom_call.1} parent=5 // pred_check_branch
        %282 = sbr.rel (%p280) target = $region32
      $region31: #{tpu_custom_call.1} parent=5 // pred_region
        // Predicated region
        $region33: #{tpu_custom_call.1} parent=31 // pred_check
          %p283 = pneg %p58
        $region34: #{tpu_custom_call.1} parent=31 // pred_check_branch
          %285 = sbr.rel (%p283) target = $region36
        $region35: #{tpu_custom_call.1} parent=31 // pred_region
          %s286 = sand.u32 %s48, 1
          %s287 = scalar_lea.sflag [#allocation3], %s286
          %s288 = sand.u32 %s48, 1
          %s289 = smul.addr %s288, 8
          %s290 = scalar_lea.vmem [#allocation2], %s289
          %292 = vsyncadd %s287, 0
          %s293 = sadd.s32 %s32, %s31
          %s294 = smul.addr %s293, 8
          %s295 = scalar_lea.hbm %s0, %s294
          %s297 = sshll.u32 %s295, 4
          %s298 = int_to_ptr.hbm [resolvable:$true] %s297
          %s299 = sshll.u32 %s290, 4
          %s300 = int_to_ptr.vmem [resolvable:$true] %s299
          %302 = dma.hbm_to_vmem [thread:$0]  %s298, 128, %s300, %s287
        $region36: #{tpu_custom_call.1} parent=31 // pred_fallthru
          _
      $region32: #{tpu_custom_call.1} parent=5 // pred_fallthru
        _
      %p303 = scmp.le.s32.totalorder 1, %s24
      %p304 = scmp.lt.s32.totalorder %s24, 3
      %p305 = pnand %p303, %p304
      %p306 = pneg %p305
      // Predicated region
      $region37: #{tpu_custom_call.1} parent=5 // pred_check
        _
      $region38: #{tpu_custom_call.1} parent=5 // pred_check_branch
        %308 = sbr.rel (%p305) target = $region40
      $region39: #{tpu_custom_call.1} parent=5 // pred_region
        %s309 = ssub.s32 %s24, 1
        %s310 = sand.u32 %s51, 1
        %s311 = scalar_lea.sflag [#allocation3], %s310
        %s312 = sand.u32 %s51, 1
        %s313 = smul.addr %s312, 8
        %s314 = scalar_lea.vmem [#allocation2], %s313
        // Predicated region
        $region41: #{tpu_custom_call.1} parent=39 // pred_check
          %p315 = pneg %p64
        $region42: #{tpu_custom_call.1} parent=39 // pred_check_branch
          %317 = sbr.rel (%p315) target = $region44
        $region43: #{tpu_custom_call.1} parent=39 // pred_region
          %319 = dma.done %s311, 128
        $region44: #{tpu_custom_call.1} parent=39 // pred_fallthru
          _
        // Predicated region
        $region45: #{tpu_custom_call.1} parent=39 // pred_check
          %p320 = pneg %p85
        $region46: #{tpu_custom_call.1} parent=39 // pred_check_branch
          %322 = sbr.rel (%p320) target = $region48
        $region47: #{tpu_custom_call.1} parent=39 // pred_region
          %324 = dma.done [#allocation6], 16
        $region48: #{tpu_custom_call.1} parent=39 // pred_fallthru
          _
        // Predicated region
        $region49: #{tpu_custom_call.1} parent=39 // pred_check
          %p325 = pneg %p127
        $region50: #{tpu_custom_call.1} parent=39 // pred_check_branch
          %327 = sbr.rel (%p325) target = $region52
        $region51: #{tpu_custom_call.1} parent=39 // pred_region
          %329 = dma.done [#allocation6], 256
        $region52: #{tpu_custom_call.1} parent=39 // pred_fallthru
          _
        %s330 = sand.u32 %s51, 1
        %s331 = scalar_lea.sflag [#allocation3], %s330
        %s332 = sand.u32 %s51, 1
        %s333 = smul.addr %s332, 8
        %s334 = scalar_lea.vmem [#allocation2], %s333
        %p335 = pneg %p64
        %p336 = pneg %p61
        %p337 = pneg %p85
        %p338 = pneg %p82
        %p339 = pneg %p106
        %p340 = pneg %p103
        %p341 = pneg %p127
        %p342 = pneg %p124
        %p343 = pneg %p148
        %p344 = pneg %p145
        %p345 = pneg %p176
        %p346 = pneg %p173
        %s347 = sand.u32 %s163, 1
        %s348 = scalar_lea.sflag [#allocation4], %s347
        %s349 = sand.u32 %s163, 1
        %s350 = smul.addr %s349, 16
        %s351 = scalar_lea.vmem [#allocation8], %s350
        %p352 = pneg %p204
        %p353 = pneg %p201
        %s354 = sand.u32 %s29, 1
        %s355 = scalar_lea.sflag [#allocation10], %s354
        %s356 = sand.u32 %s191, 1
        %s357 = smul.addr %s356, 16
        %s358 = scalar_lea.vmem [#allocation9], %s357
        %p359 = pneg %p232
        %p360 = pneg %p229
        %s361 = sand.u32 %s29, 1
        %s362 = scalar_lea.sflag [#allocation10], %s361
        %s363 = sand.u32 %s219, 1
        %s364 = smul.addr %s363, 16
        %s365 = scalar_lea.vmem [#allocation11], %s364
        %v367 = vld [vmem:[%s314] sm:$0xff]
        %v368 = vld [vmem:[#allocation5] sm:$0x1]
        %v369 = vld [vmem:[%s2] sm:$0x1]
        %vm370 = vcmask 261120
        %v371 = vsel %vm370, %v367, 0.0
        %372 = vadd.xlane.f32.xlu0 %v371
        %v373 = vpop.xlane.xlu0 %372
        %v374 = vrcp.pop 32.0
        %v375 = vmul.f32 32.0, %v374
        %v376 = vsub.f32 1.0, %v375
        %v377 = vmul.f32 %v374, %v376
        %v378 = vadd.f32 %v374, %v377
        %vm379 = vweird.f32 %v374
        %v380 = vsel %vm379, %v374, %v378
        %v381 = vmul.f32 %v373, %v380
        %v382 = vmul.f32 %v367, %v367
        %v383 = vsel %vm370, %v382, 0.0
        %384 = vadd.xlane.f32.xlu0 %v383
        %v385 = vpop.xlane.xlu0 %384
        %v386 = vmul.f32 %v385, %v380
        %v387 = vmul.f32 %v381, %v381
        %v388 = vsub.f32 %v386, %v387
        %v389 = vmax.f32 %v388, 0.0
        %v390 = vadd.f32 %v389, 1e-05
        %v391 = vrsqrt.pop %v390
        %v392 = vmul.f32 %v391, %v390
        %v393 = vmul.f32 %v392, %v391
        %v394 = vmul.f32 0.5, %v393
        %v395 = vsub.f32 1.5, %v394
        %v396 = vmul.f32 %v391, %v395
        %vm397 = vweird.f32 %v390
        %vm398 = vweird.f32 %v391
        %vm399 = vmor %vm397, %vm398
        %v400 = vsel %vm399, %v391, %v396
        %v401 = vsub.f32 %v367, %v381
        %v402 = vmul.f32 %v401, %v400
        %v404 = vperm.slane %v368, 0
        %v406 = vmul.f32 %v402, %v404
        %v408 = vperm.slane %v369, 0
        %v410 = vadd.f32 %v406, %v408
        %v411 = vpack.c.bf16 %v410, %v410
        %v412 = vld [vmem:[#allocation7] sm:$0xf]
        %v413 = vld [vmem:[#allocation7 + $0x4] sm:$0xf]
        %v414 = vld [vmem:[#allocation7 + $0x8] sm:$0xf]
        %v415 = vld [vmem:[#allocation7 + $0xc] sm:$0xf]
        %v416 = vld [vmem:[%s4] sm:$0x1]
        %v418 = vperm.slane %v416, 0
        %v424 = vunpack.c.l.b16 %v412
        %v425 = vunpack.c.l.b16 %v413
        %v426 = vunpack.c.l.b16 %v414
        %v427 = vunpack.c.l.b16 %v415
        %v428 = vpack.c.b16 %v425, %v424
        %v429 = vpack.c.b16 %v427, %v426
        %v433 = vsel %vm370, %v411, 0
        %435 = vmatpush.bf16.msra.mxu0 0
        %436 = vmatpush.bf16.msra.mxu0 0
        %437 = vmatpush.bf16.msra.mxu0 0
        %438 = vmatpush.bf16.msra.mxu0 0
        %439 = vmatpush.bf16.msra.mxu0 0
        %440 = vmatpush.bf16.msra.mxu0 0
        %441 = vmatpush.bf16.msra.mxu0 %v429
        %442 = vmatpush.bf16.msra.mxu0 %v428
        %443 = vmatmul.bf16.gmra.mxu0 %v433
        %v444 = vpop.f32.mrf.mxu0
        %v445 = vadd.f32 %v418, %v444
        %v446 = vpop.f32.mrf.mxu0
        %447 = vdwg.mxu0
        %v448 = vmul.f32 %v445, 0.35355338
        %450 = vrot.lane.b32.xlu0 %v448, 120
        %v451 = vpop.permute.xlu0 %450
        %453 = vrot.lane.b32.xlu0 %v448, 112
        %v454 = vpop.permute.xlu0 %453
        %456 = vrot.lane.b32.xlu0 %v448, 104
        %v457 = vpop.permute.xlu0 %456
        %v459 = vrot.slane %v454, 4
        %vm460 = vcmask 1047556
        %v461 = vsel %vm460, %v459, %v448
        %v462 = vrot.slane %v448, 4
        %v463 = vsel %vm460, %v454, %v462
        %v465 = vunpack.c.l.s4 1983009808
        %v466 = vunpack.c.0.s8 %v465
        %v467 = vperm.slane %v461, %v466
        %v469 = vunpack.c.l.s4 1983009808
        %v470 = vunpack.c.0.s8 %v469
        %v471 = vperm.slane %v463, %v470
        %v472 = vrot.slane %v457, 4
        %v473 = vsel %vm460, %v472, %v451
        %v474 = vrot.slane %v451, 4
        %v475 = vsel %vm460, %v457, %v474
        %v477 = vunpack.c.l.s4 1983009808
        %v478 = vunpack.c.0.s8 %v477
        %v479 = vperm.slane %v473, %v478
        %v481 = vunpack.c.l.s4 1983009808
        %v482 = vunpack.c.0.s8 %v481
        %v483 = vperm.slane %v475, %v482
        %v484 = vrot.slane %v479, 4
        %v485 = vsel %vm460, %v484, %v467
        %v486 = vrot.slane %v467, 4
        %v487 = vsel %vm460, %v479, %v486
        %v489 = vunpack.c.l.s4 1934713408
        %v490 = vunpack.c.0.s8 %v489
        %v491 = vperm.slane %v485, %v490
        %v493 = vunpack.c.l.s4 1934713408
        %v494 = vunpack.c.0.s8 %v493
        %v495 = vperm.slane %v487, %v494
        %v496 = vrot.slane %v483, 4
        %v497 = vsel %vm460, %v496, %v471
        %v498 = vrot.slane %v471, 4
        %v499 = vsel %vm460, %v483, %v498
        %v501 = vunpack.c.l.s4 1934713408
        %v502 = vunpack.c.0.s8 %v501
        %v503 = vperm.slane %v497, %v502
        %v505 = vunpack.c.l.s4 1934713408
        %v506 = vunpack.c.0.s8 %v505
        %v507 = vperm.slane %v499, %v506
        %v508 = vrot.slane %v491, 4
        %v509 = vsel %vm460, 0.0, %v508
        %v510 = vrot.slane %v495, 4
        %v511 = vsel %vm460, 0.0, %v510
        %v512 = vrot.slane %v503, 4
        %v513 = vsel %vm460, 0.0, %v512
        %v514 = vrot.slane %v507, 4
        %v515 = vsel %vm460, 0.0, %v514
        %v516 = vsel %vm460, %v510, %v491
        %v518 = vunpack.c.l.s4 1983009808
        %v519 = vunpack.c.0.s8 %v518
        %v520 = vperm.slane %v516, %v519
        %v521 = vrot.slane %v511, 4
        %v522 = vsel %vm460, %v521, %v509
        %v524 = vunpack.c.l.s4 1983009808
        %v525 = vunpack.c.0.s8 %v524
        %v526 = vperm.slane %v522, %v525
        %v527 = vsel %vm460, %v514, %v503
        %v529 = vunpack.c.l.s4 1983009808
        %v530 = vunpack.c.0.s8 %v529
        %v531 = vperm.slane %v527, %v530
        %v532 = vrot.slane %v515, 4
        %v533 = vsel %vm460, %v532, %v513
        %v535 = vunpack.c.l.s4 1983009808
        %v536 = vunpack.c.0.s8 %v535
        %v537 = vperm.slane %v533, %v536
        %v538 = vrot.slane %v526, 4
        %v539 = vsel %vm460, %v538, %v520
        %v540 = vrot.slane %v520, 4
        %v541 = vsel %vm460, %v526, %v540
        %v543 = vunpack.c.l.s4 1934713408
        %v544 = vunpack.c.0.s8 %v543
        %v545 = vperm.slane %v539, %v544
        %v547 = vunpack.c.l.s4 1934713408
        %v548 = vunpack.c.0.s8 %v547
        %v549 = vperm.slane %v541, %v548
        %v550 = vrot.slane %v537, 4
        %v551 = vsel %vm460, %v550, %v531
        %v552 = vrot.slane %v531, 4
        %v553 = vsel %vm460, %v537, %v552
        %v555 = vunpack.c.l.s4 1934713408
        %v556 = vunpack.c.0.s8 %v555
        %v557 = vperm.slane %v551, %v556
        %v559 = vunpack.c.l.s4 1934713408
        %v560 = vunpack.c.0.s8 %v559
        %v561 = vperm.slane %v553, %v560
        %v562 = vrot.slane %v557, 4
        %v563 = vsel %vm460, %v562, %v545
        %v564 = vrot.slane %v545, 4
        %v565 = vsel %vm460, %v557, %v564
        %v566 = vrot.slane %v561, 4
        %v567 = vsel %vm460, %v566, %v549
        %v568 = vrot.slane %v549, 4
        %v569 = vsel %vm460, %v561, %v568
        %v570 = vpack.c.bf16 %v563, %v563
        %v571 = vpack.c.bf16 %v565, %v565
        %v572 = vpack.c.bf16 %v567, %v567
        %v573 = vpack.c.bf16 %v569, %v569
        %vm574 = vcmask 60416
        %575 = vst.msk [vmem:[%s351] sm:$0xf] %vm574, %v570
        %576 = vst.msk [vmem:[%s351 + $0x4] sm:$0xf] %vm574, %v571
        %577 = vst.msk [vmem:[%s351 + $0x8] sm:$0xf] %vm574, %v572
        %578 = vst.msk [vmem:[%s351 + $0xc] sm:$0xf] %vm574, %v573
        %580 = vrot.lane.b32.xlu0 %v445, 120
        %v581 = vpop.permute.xlu0 %580
        %582 = vrot.lane.b32.xlu0 %v445, 112
        %v583 = vpop.permute.xlu0 %582
        %584 = vrot.lane.b32.xlu0 %v445, 104
        %v585 = vpop.permute.xlu0 %584
        %586 = vrot.lane.b32.xlu0 %v445, 96
        %v587 = vpop.permute.xlu0 %586
        %588 = vrot.lane.b32.xlu0 %v581, 96
        %v589 = vpop.permute.xlu0 %588
        %590 = vrot.lane.b32.xlu0 %v583, 96
        %v591 = vpop.permute.xlu0 %590
        %592 = vrot.lane.b32.xlu0 %v585, 96
        %v593 = vpop.permute.xlu0 %592
        %v598 = vrot.slane %v591, 4
        %v599 = vsel %vm460, %v598, %v587
        %v600 = vrot.slane %v587, 4
        %v601 = vsel %vm460, %v591, %v600
        %v603 = vunpack.c.l.s4 1983009808
        %v604 = vunpack.c.0.s8 %v603
        %v605 = vperm.slane %v599, %v604
        %v607 = vunpack.c.l.s4 1983009808
        %v608 = vunpack.c.0.s8 %v607
        %v609 = vperm.slane %v601, %v608
        %v610 = vrot.slane %v593, 4
        %v611 = vsel %vm460, %v610, %v589
        %v612 = vrot.slane %v589, 4
        %v613 = vsel %vm460, %v593, %v612
        %v615 = vunpack.c.l.s4 1983009808
        %v616 = vunpack.c.0.s8 %v615
        %v617 = vperm.slane %v611, %v616
        %v619 = vunpack.c.l.s4 1983009808
        %v620 = vunpack.c.0.s8 %v619
        %v621 = vperm.slane %v613, %v620
        %v622 = vrot.slane %v617, 4
        %v623 = vsel %vm460, %v622, %v605
        %v624 = vrot.slane %v605, 4
        %v625 = vsel %vm460, %v617, %v624
        %v627 = vunpack.c.l.s4 1934713408
        %v628 = vunpack.c.0.s8 %v627
        %v629 = vperm.slane %v623, %v628
        %v631 = vunpack.c.l.s4 1934713408
        %v632 = vunpack.c.0.s8 %v631
        %v633 = vperm.slane %v625, %v632
        %v634 = vrot.slane %v621, 4
        %v635 = vsel %vm460, %v634, %v609
        %v636 = vrot.slane %v609, 4
        %v637 = vsel %vm460, %v621, %v636
        %v639 = vunpack.c.l.s4 1934713408
        %v640 = vunpack.c.0.s8 %v639
        %v641 = vperm.slane %v635, %v640
        %v643 = vunpack.c.l.s4 1934713408
        %v644 = vunpack.c.0.s8 %v643
        %v645 = vperm.slane %v637, %v644
        %v646 = vrot.slane %v629, 4
        %v647 = vsel %vm460, 0.0, %v646
        %v648 = vrot.slane %v633, 4
        %v649 = vsel %vm460, 0.0, %v648
        %v650 = vrot.slane %v641, 4
        %v651 = vsel %vm460, 0.0, %v650
        %v652 = vrot.slane %v645, 4
        %v653 = vsel %vm460, 0.0, %v652
        %v654 = vsel %vm460, %v648, %v629
        %v656 = vunpack.c.l.s4 1983009808
        %v657 = vunpack.c.0.s8 %v656
        %v658 = vperm.slane %v654, %v657
        %v659 = vrot.slane %v649, 4
        %v660 = vsel %vm460, %v659, %v647
        %v662 = vunpack.c.l.s4 1983009808
        %v663 = vunpack.c.0.s8 %v662
        %v664 = vperm.slane %v660, %v663
        %v665 = vsel %vm460, %v652, %v641
        %v667 = vunpack.c.l.s4 1983009808
        %v668 = vunpack.c.0.s8 %v667
        %v669 = vperm.slane %v665, %v668
        %v670 = vrot.slane %v653, 4
        %v671 = vsel %vm460, %v670, %v651
        %v673 = vunpack.c.l.s4 1983009808
        %v674 = vunpack.c.0.s8 %v673
        %v675 = vperm.slane %v671, %v674
        %v676 = vrot.slane %v664, 4
        %v677 = vsel %vm460, %v676, %v658
        %v678 = vrot.slane %v658, 4
        %v679 = vsel %vm460, %v664, %v678
        %v681 = vunpack.c.l.s4 1934713408
        %v682 = vunpack.c.0.s8 %v681
        %v683 = vperm.slane %v677, %v682
        %v685 = vunpack.c.l.s4 1934713408
        %v686 = vunpack.c.0.s8 %v685
        %v687 = vperm.slane %v679, %v686
        %v688 = vrot.slane %v675, 4
        %v689 = vsel %vm460, %v688, %v669
        %v690 = vrot.slane %v669, 4
        %v691 = vsel %vm460, %v675, %v690
        %v693 = vunpack.c.l.s4 1934713408
        %v694 = vunpack.c.0.s8 %v693
        %v695 = vperm.slane %v689, %v694
        %v697 = vunpack.c.l.s4 1934713408
        %v698 = vunpack.c.0.s8 %v697
        %v699 = vperm.slane %v691, %v698
        %v700 = vrot.slane %v695, 4
        %v701 = vsel %vm460, %v700, %v683
        %v702 = vrot.slane %v683, 4
        %v703 = vsel %vm460, %v695, %v702
        %v704 = vrot.slane %v699, 4
        %v705 = vsel %vm460, %v704, %v687
        %v706 = vrot.slane %v687, 4
        %v707 = vsel %vm460, %v699, %v706
        %v708 = vpack.c.bf16 %v701, %v701
        %v709 = vpack.c.bf16 %v703, %v703
        %v710 = vpack.c.bf16 %v705, %v705
        %v711 = vpack.c.bf16 %v707, %v707
        %712 = vst.msk [vmem:[%s358] sm:$0xf] %vm574, %v708
        %713 = vst.msk [vmem:[%s358 + $0x4] sm:$0xf] %vm574, %v709
        %714 = vst.msk [vmem:[%s358 + $0x8] sm:$0xf] %vm574, %v710
        %715 = vst.msk [vmem:[%s358 + $0xc] sm:$0xf] %vm574, %v711
        %716 = vrot.lane.b32.xlu0 %v445, 64
        %v717 = vpop.permute.xlu0 %716
        %718 = vrot.lane.b32.xlu0 %v581, 64
        %v719 = vpop.permute.xlu0 %718
        %720 = vrot.lane.b32.xlu0 %v583, 64
        %v721 = vpop.permute.xlu0 %720
        %722 = vrot.lane.b32.xlu0 %v585, 64
        %v723 = vpop.permute.xlu0 %722
        %v728 = vrot.slane %v721, 4
        %v729 = vsel %vm460, %v728, %v717
        %v730 = vrot.slane %v717, 4
        %v731 = vsel %vm460, %v721, %v730
        %v733 = vunpack.c.l.s4 1983009808
        %v734 = vunpack.c.0.s8 %v733
        %v735 = vperm.slane %v729, %v734
        %v737 = vunpack.c.l.s4 1983009808
        %v738 = vunpack.c.0.s8 %v737
        %v739 = vperm.slane %v731, %v738
        %v740 = vrot.slane %v723, 4
        %v741 = vsel %vm460, %v740, %v719
        %v742 = vrot.slane %v719, 4
        %v743 = vsel %vm460, %v723, %v742
        %v745 = vunpack.c.l.s4 1983009808
        %v746 = vunpack.c.0.s8 %v745
        %v747 = vperm.slane %v741, %v746
        %v749 = vunpack.c.l.s4 1983009808
        %v750 = vunpack.c.0.s8 %v749
        %v751 = vperm.slane %v743, %v750
        %v752 = vrot.slane %v747, 4
        %v753 = vsel %vm460, %v752, %v735
        %v754 = vrot.slane %v735, 4
        %v755 = vsel %vm460, %v747, %v754
        %v757 = vunpack.c.l.s4 1934713408
        %v758 = vunpack.c.0.s8 %v757
        %v759 = vperm.slane %v753, %v758
        %v761 = vunpack.c.l.s4 1934713408
        %v762 = vunpack.c.0.s8 %v761
        %v763 = vperm.slane %v755, %v762
        %v764 = vrot.slane %v751, 4
        %v765 = vsel %vm460, %v764, %v739
        %v766 = vrot.slane %v739, 4
        %v767 = vsel %vm460, %v751, %v766
        %v769 = vunpack.c.l.s4 1934713408
        %v770 = vunpack.c.0.s8 %v769
        %v771 = vperm.slane %v765, %v770
        %v773 = vunpack.c.l.s4 1934713408
        %v774 = vunpack.c.0.s8 %v773
        %v775 = vperm.slane %v767, %v774
        %v776 = vrot.slane %v759, 4
        %v777 = vsel %vm460, 0.0, %v776
        %v778 = vrot.slane %v763, 4
        %v779 = vsel %vm460, 0.0, %v778
        %v780 = vrot.slane %v771, 4
        %v781 = vsel %vm460, 0.0, %v780
        %v782 = vrot.slane %v775, 4
        %v783 = vsel %vm460, 0.0, %v782
        %v784 = vsel %vm460, %v778, %v759
        %v786 = vunpack.c.l.s4 1983009808
        %v787 = vunpack.c.0.s8 %v786
        %v788 = vperm.slane %v784, %v787
        %v789 = vrot.slane %v779, 4
        %v790 = vsel %vm460, %v789, %v777
        %v792 = vunpack.c.l.s4 1983009808
        %v793 = vunpack.c.0.s8 %v792
        %v794 = vperm.slane %v790, %v793
        %v795 = vsel %vm460, %v782, %v771
        %v797 = vunpack.c.l.s4 1983009808
        %v798 = vunpack.c.0.s8 %v797
        %v799 = vperm.slane %v795, %v798
        %v800 = vrot.slane %v783, 4
        %v801 = vsel %vm460, %v800, %v781
        %v803 = vunpack.c.l.s4 1983009808
        %v804 = vunpack.c.0.s8 %v803
        %v805 = vperm.slane %v801, %v804
        %v806 = vrot.slane %v794, 4
        %v807 = vsel %vm460, %v806, %v788
        %v808 = vrot.slane %v788, 4
        %v809 = vsel %vm460, %v794, %v808
        %v811 = vunpack.c.l.s4 1934713408
        %v812 = vunpack.c.0.s8 %v811
        %v813 = vperm.slane %v807, %v812
        %v815 = vunpack.c.l.s4 1934713408
        %v816 = vunpack.c.0.s8 %v815
        %v817 = vperm.slane %v809, %v816
        %v818 = vrot.slane %v805, 4
        %v819 = vsel %vm460, %v818, %v799
        %v820 = vrot.slane %v799, 4
        %v821 = vsel %vm460, %v805, %v820
        %v823 = vunpack.c.l.s4 1934713408
        %v824 = vunpack.c.0.s8 %v823
        %v825 = vperm.slane %v819, %v824
        %v827 = vunpack.c.l.s4 1934713408
        %v828 = vunpack.c.0.s8 %v827
        %v829 = vperm.slane %v821, %v828
        %v830 = vrot.slane %v825, 4
        %v831 = vsel %vm460, %v830, %v813
        %v832 = vrot.slane %v813, 4
        %v833 = vsel %vm460, %v825, %v832
        %v834 = vrot.slane %v829, 4
        %v835 = vsel %vm460, %v834, %v817
        %v836 = vrot.slane %v817, 4
        %v837 = vsel %vm460, %v829, %v836
        %v838 = vpack.c.bf16 %v831, %v831
        %v839 = vpack.c.bf16 %v833, %v833
        %v840 = vpack.c.bf16 %v835, %v835
        %v841 = vpack.c.bf16 %v837, %v837
        %842 = vst.msk [vmem:[%s365] sm:$0xf] %vm574, %v838
        %843 = vst.msk [vmem:[%s365 + $0x4] sm:$0xf] %vm574, %v839
        %844 = vst.msk [vmem:[%s365 + $0x8] sm:$0xf] %vm574, %v840
        %845 = vst.msk [vmem:[%s365 + $0xc] sm:$0xf] %vm574, %v841
        %s846 = sand.u32 %s163, 1
        %s847 = scalar_lea.sflag [#allocation4], %s846
        %s848 = sand.u32 %s163, 1
        %s849 = smul.addr %s848, 16
        %s850 = scalar_lea.vmem [#allocation8], %s849
        %s851 = sand.u32 %s29, 1
        %s852 = scalar_lea.sflag [#allocation10], %s851
        %s853 = sand.u32 %s191, 1
        %s854 = smul.addr %s853, 16
        %s855 = scalar_lea.vmem [#allocation9], %s854
        %s856 = sand.u32 %s29, 1
        %s857 = scalar_lea.sflag [#allocation10], %s856
        %s858 = sand.u32 %s219, 1
        %s859 = smul.addr %s858, 16
        %s860 = scalar_lea.vmem [#allocation11], %s859
        // Predicated region
        $region53: #{tpu_custom_call.1} parent=39 // pred_check
          %p861 = pneg %p173
        $region54: #{tpu_custom_call.1} parent=39 // pred_check_branch
          %863 = sbr.rel (%p861) target = $region56
        $region55: #{tpu_custom_call.1} parent=39 // pred_region
          %865 = vsyncadd %s847, 0
          %s866 = smul.addr %s33, 4
          %s867 = sadd.s32 %s34, %s866
          %s868 = smul.addr %s867, 4
          %s869 = scalar_lea.hbm %s5, %s868
          %s870 = sshll.u32 %s850, 4
          %s871 = int_to_ptr.vmem [resolvable:$true] %s870
          %s872 = sshll.u32 %s869, 4
          %s873 = int_to_ptr.hbm [resolvable:$true] %s872
          %878 = dma.vmem_to_hbm [thread:$0]  %s871, 256, %s873, %s847, 64, 64, 4
        $region56: #{tpu_custom_call.1} parent=39 // pred_fallthru
          _
        // Predicated region
        $region57: #{tpu_custom_call.1} parent=39 // pred_check
          %p879 = pneg %p201
        $region58: #{tpu_custom_call.1} parent=39 // pred_check_branch
          %881 = sbr.rel (%p879) target = $region60
        $region59: #{tpu_custom_call.1} parent=39 // pred_region
          %883 = vsyncadd %s852, 0
          %s884 = smul.addr %s33, 4
          %s885 = sadd.s32 %s34, %s884
          %s886 = smul.addr %s885, 4
          %s887 = scalar_lea.hbm %s6, %s886
          %s888 = sshll.u32 %s855, 4
          %s889 = int_to_ptr.vmem [resolvable:$true] %s888
          %s890 = sshll.u32 %s887, 4
          %s891 = int_to_ptr.hbm [resolvable:$true] %s890
          %896 = dma.vmem_to_hbm [thread:$0]  %s889, 256, %s891, %s852, 64, 64, 4
        $region60: #{tpu_custom_call.1} parent=39 // pred_fallthru
          _
        // Predicated region
        $region61: #{tpu_custom_call.1} parent=39 // pred_check
          %p897 = pneg %p229
        $region62: #{tpu_custom_call.1} parent=39 // pred_check_branch
          %899 = sbr.rel (%p897) target = $region64
        $region63: #{tpu_custom_call.1} parent=39 // pred_region
          %901 = vsyncadd %s857, 0
          %s902 = smul.addr %s33, 4
          %s903 = sadd.s32 %s34, %s902
          %s904 = smul.addr %s903, 4
          %s905 = scalar_lea.hbm %s7, %s904
          %s906 = sshll.u32 %s860, 4
          %s907 = int_to_ptr.vmem [resolvable:$true] %s906
          %s908 = sshll.u32 %s905, 4
          %s909 = int_to_ptr.hbm [resolvable:$true] %s908
          %914 = dma.vmem_to_hbm [thread:$0]  %s907, 256, %s909, %s857, 64, 64, 4
        $region64: #{tpu_custom_call.1} parent=39 // pred_fallthru
          _
      $region40: #{tpu_custom_call.1} parent=5 // pred_fallthru
        _
      %p915 = scmp.le.s32.totalorder 2, %s24
      // Predicated region
      $region65: #{tpu_custom_call.1} parent=5 // pred_check
        %p916 = pneg %p915
      $region66: #{tpu_custom_call.1} parent=5 // pred_check_branch
        %918 = sbr.rel (%p916) target = $region68
      $region67: #{tpu_custom_call.1} parent=5 // pred_region
        %s919 = ssub.s32 %s24, 2
        // Predicated region
        $region69: #{tpu_custom_call.1} parent=67 // pred_check
          %p920 = pneg %p179
        $region70: #{tpu_custom_call.1} parent=67 // pred_check_branch
          %922 = sbr.rel (%p920) target = $region72
        $region71: #{tpu_custom_call.1} parent=67 // pred_region
          %s923 = sand.u32 %s164, 1
          %s924 = scalar_lea.sflag [#allocation4], %s923
          %s925 = sand.u32 %s164, 1
          %s926 = smul.addr %s925, 16
          %s927 = scalar_lea.vmem [#allocation8], %s926
          %929 = dma.done %s924, 256
        $region72: #{tpu_custom_call.1} parent=67 // pred_fallthru
          _
        // Predicated region
        $region73: #{tpu_custom_call.1} parent=67 // pred_check
          %p930 = pneg %p207
        $region74: #{tpu_custom_call.1} parent=67 // pred_check_branch
          %932 = sbr.rel (%p930) target = $region76
        $region75: #{tpu_custom_call.1} parent=67 // pred_region
          %s933 = sand.u32 %s30, 1
          %s934 = scalar_lea.sflag [#allocation10], %s933
          %s935 = sand.u32 %s192, 1
          %s936 = smul.addr %s935, 16
          %s937 = scalar_lea.vmem [#allocation9], %s936
          %939 = dma.done %s934, 256
        $region76: #{tpu_custom_call.1} parent=67 // pred_fallthru
          _
        // Predicated region
        $region77: #{tpu_custom_call.1} parent=67 // pred_check
          %p940 = pneg %p235
        $region78: #{tpu_custom_call.1} parent=67 // pred_check_branch
          %942 = sbr.rel (%p940) target = $region80
        $region79: #{tpu_custom_call.1} parent=67 // pred_region
          %s943 = sand.u32 %s30, 1
          %s944 = scalar_lea.sflag [#allocation10], %s943
          %s945 = sand.u32 %s220, 1
          %s946 = smul.addr %s945, 16
          %s947 = scalar_lea.vmem [#allocation11], %s946
          %949 = dma.done %s944, 256
        $region80: #{tpu_custom_call.1} parent=67 // pred_fallthru
          _
      $region68: #{tpu_custom_call.1} parent=5 // pred_fallthru
        _
    $region6: #{tpu_custom_call.1} parent=1 // loop_footer
      %s28 = sadd.s32 1, %s24
    $region7: #{tpu_custom_call.1} parent=1 // loop_footer_branch
      %23 = sbr.rel target = $region3
    $region8: #{tpu_custom_call.1} parent=1 // loop_exit
      _
    %950 = vsyncpa [#allocation3], 1
    %s951 = scalar_lea.sflag [#allocation3], 1
    %952 = vsyncpa %s951, 1
    %953 = vsyncpa [#allocation6], 1
    %954 = vsyncpa [#allocation4], 1
    %s955 = scalar_lea.sflag [#allocation4], 1
    %956 = vsyncpa %s955, 1
    %957 = vsyncpa [#allocation10], 1
    %s958 = scalar_lea.sflag [#allocation10], 1
    %959 = vsyncpa %s958, 1

// kernel: tpu_custom_call.1
$region0: #{tpu_custom_call.1}
  #allocation0 [shape = 'u32[]', space=smem, size = 0x4, offset = 0x4, fixed_abs, tag = 'smem constant byte address 0x4 - core index']
  #allocation1 [shape = 'u32[72,128]{1,0:T(1,128)}', space=vmem, size = 0x9000, scoped, tag = 'internal scratch']
  %s0 = inlined_call_operand.hbm [shape: f32[2,8,32], index: 0, kind: input, shape index: {}]
  %s1 = inlined_call_operand.hbm [shape: f32[1,32], index: 1, kind: input, shape index: {}]
  %s2 = inlined_call_operand.vmem [shape: f32[1,32], index: 2, kind: input, shape index: {}]
  %s3 = inlined_call_operand.hbm [shape: bf16[32,96], index: 3, kind: input, shape index: {}]
  %s4 = inlined_call_operand.vmem [shape: f32[1,96], index: 4, kind: input, shape index: {}]
  %s5 = inlined_call_operand.hbm [shape: bf16[2,4,8,8], index: 5, kind: output, shape index: {0}]
  %s6 = inlined_call_operand.hbm [shape: bf16[2,4,8,8], index: 6, kind: output, shape index: {1}]
  %s7 = inlined_call_operand.hbm [shape: bf16[2,4,8,8], index: 7, kind: output, shape index: {2}]
  %8 = xla_tuple %s5, %s6, %s7
  %s9 = sld [smem:[#allocation0]]
  $region81: #{tpu_custom_call.1} parent=0
    _
  %s11 = ssub.s32 1, %s9
  %s12 = scalar_select 0, %s11, %s9
  $region1: #{tpu_custom_call.1} parent=0
    #allocation2 [shape = 'u8[8192]{0}', space=vmem, size = 0x2000, scoped, tag = 'input window, operand 0']
    #allocation3 [shape = 's32[2]{0}', space=sflag, size = 0x8, scoped, tag = 'scoped memory for tpu_custom_call.1']
    #allocation4 [shape = 's32[2]{0}', space=sflag, size = 0x8, scoped, tag = 'scoped memory for tpu_custom_call.1']
    #allocation5 [shape = 'u8[512]{0}', space=vmem, size = 0x400, scoped, tag = 'input window, operand 1, single buffered']
    #allocation6 [shape = 's32[1]{0}', space=sflag, size = 0x4, scoped, tag = 'scoped memory for tpu_custom_call.1']
    #allocation7 [shape = 'u8[8192]{0}', space=vmem, size = 0x2000, scoped, tag = 'input window, operand 3, single buffered']
    #allocation8 [shape = 'u8[16384]{0}', space=vmem, size = 0x4000, scoped, tag = 'output window, operand 0']
    #allocation9 [shape = 'u8[16384]{0}', space=vmem, size = 0x4000, scoped, tag = 'output window, operand 1']
    #allocation10 [shape = 's32[2]{0}', space=sflag, size = 0x8, scoped, tag = 'scoped memory for tpu_custom_call.1']
    #allocation11 [shape = 'u8[16384]{0}', space=vmem, size = 0x4000, scoped, tag = 'output window, operand 2']
    %13 = vsyncpa [#allocation3], 0
    %s14 = scalar_lea.sflag [#allocation3], 1
    %15 = vsyncpa %s14, 0
    %16 = vsyncpa [#allocation6], 0
    %17 = vsyncpa [#allocation4], 0
    %s18 = scalar_lea.sflag [#allocation4], 1
    %19 = vsyncpa %s18, 0
    %20 = vsyncpa [#allocation10], 0
    %s21 = scalar_lea.sflag [#allocation10], 1
    %22 = vsyncpa %s21, 0
    loop: start=0, step=1, limit=4
    $region2: #{tpu_custom_call.1} parent=1 // loop_pre_header
      _
    $region3: #{tpu_custom_call.1} parent=1 // loop_header
      %s24 = sphi 0, %s28
      %p25 = scmp.ge.s32.totalorder %s24, 4
      %s31 = sphi 0, %s43
      %s32 = sphi 0, %s39
      %s33 = sphi 0, %s31
      %s34 = sphi 0, %s32
      %s35 = sphi 0, %s33
      %s36 = sphi 0, %s34
      %s48 = sphi 0, %s50
      %s51 = sphi 0, %s48
      %s52 = sphi 0, %s51
      %s68 = sphi 0, %s52
      %s72 = sphi 0, %s72
      %s74 = sphi 0, %s72
      %s75 = sphi 0, %s74
      %s89 = sphi 0, %s75
      %s93 = sphi 0, %s93
      %s95 = sphi 0, %s93
      %s96 = sphi 0, %s95
      %s110 = sphi 0, %s96
      %s114 = sphi 0, %s114
      %s116 = sphi 0, %s114
      %s117 = sphi 0, %s116
      %s131 = sphi 0, %s117
      %s135 = sphi 0, %s135
      %s137 = sphi 0, %s135
      %s138 = sphi 0, %s137
      %s152 = sphi 0, %s138
      %s160 = sphi 0, %s162
      %s163 = sphi 0, %s160
      %s164 = sphi 0, %s163
      %s180 = sphi 0, %s164
      %s188 = sphi 0, %s190
      %s191 = sphi 0, %s188
      %s192 = sphi 0, %s191
      %s208 = sphi 0, %s192
      %s216 = sphi 0, %s218
      %s219 = sphi 0, %s216
      %s220 = sphi 0, %s219
      %s236 = sphi 0, %s220
    $region4: #{tpu_custom_call.1} parent=1 // loop_header_branch
      %27 = sbr.rel (%p25) target = $region8
    $region5: #{tpu_custom_call.1} parent=1 // loop_body
      %s29 = ssub.s32 %s24, 1
      %s30 = ssub.s32 %s24, 2
      %s37 = sadd.s32 1, %s32
      %p38 = scmp.ge.s32.totalorder %s37, 1
      %s39 = scalar_select %p38, 0, %s37
      %s40 = sadd.s32 1, %s31
      %s41 = scalar_select %p38, %s40, %s31
      %p42 = scmp.ge.s32.totalorder %s41, 2
      %s43 = scalar_select %p42, 0, %s41
      %s44 = ssub.s32 %s31, %s43
      %s45 = ssub.s32 %s32, %s39
      %s46 = sor.u32 %s44, %s45
      %p47 = scmp.eq.s32.totalorder %s46, 0
      %s49 = sadd.s32 %s48, 1
      %s50 = scalar_select %p47, %s48, %s49
      %p53 = pneg %p47
      %p54 = scmp.eq.s32.totalorder %s24, 1
      %p55 = por %p53, %p54
      %p56 = scmp.ne.s32.totalorder %s48, %s51
      %p57 = scmp.eq.s32.totalorder %s24, 0
      %p58 = por %p56, %p57
      %p59 = scmp.ne.s32.totalorder %s48, %s51
      %p60 = scmp.eq.s32.totalorder %s29, 1
      %p61 = por %p59, %p60
      %p62 = scmp.ne.s32.totalorder %s51, %s52
      %p63 = scmp.eq.s32.totalorder %s29, 0
      %p64 = por %p62, %p63
      %p65 = scmp.ne.s32.totalorder %s51, %s52
      %p66 = scmp.eq.s32.totalorder %s30, 1
      %p67 = por %p65, %p66
      %p69 = scmp.ne.s32.totalorder %s52, %s68
      %p70 = scmp.eq.s32.totalorder %s30, 0
      %p71 = por %p69, %p70
      %s73 = sadd.s32 %s72, 1
      %p76 = scmp.eq.s32.totalorder %s24, 1
      %p77 = scmp.ne.s32.totalorder %s72, %s74
      %p78 = scmp.eq.s32.totalorder %s24, 0
      %p79 = por %p77, %p78
      %p80 = scmp.ne.s32.totalorder %s72, %s74
      %p81 = scmp.eq.s32.totalorder %s29, 1
      %p82 = por %p80, %p81
      %p83 = scmp.ne.s32.totalorder %s74, %s75
      %p84 = scmp.eq.s32.totalorder %s29, 0
      %p85 = por %p83, %p84
      %p86 = scmp.ne.s32.totalorder %s74, %s75
      %p87 = scmp.eq.s32.totalorder %s30, 1
      %p88 = por %p86, %p87
      %p90 = scmp.ne.s32.totalorder %s75, %s89
      %p91 = scmp.eq.s32.totalorder %s30, 0
      %p92 = por %p90, %p91
      %s94 = sadd.s32 %s93, 1
      %p97 = scmp.eq.s32.totalorder %s24, 1
      %p98 = scmp.ne.s32.totalorder %s93, %s95
      %p99 = scmp.eq.s32.totalorder %s24, 0
      %p100 = por %p98, %p99
      %p101 = scmp.ne.s32.totalorder %s93, %s95
      %p102 = scmp.eq.s32.totalorder %s29, 1
      %p103 = por %p101, %p102
      %p104 = scmp.ne.s32.totalorder %s95, %s96
      %p105 = scmp.eq.s32.totalorder %s29, 0
      %p106 = por %p104, %p105
      %p107 = scmp.ne.s32.totalorder %s95, %s96
      %p108 = scmp.eq.s32.totalorder %s30, 1
      %p109 = por %p107, %p108
      %p111 = scmp.ne.s32.totalorder %s96, %s110
      %p112 = scmp.eq.s32.totalorder %s30, 0
      %p113 = por %p111, %p112
      %s115 = sadd.s32 %s114, 1
      %p118 = scmp.eq.s32.totalorder %s24, 1
      %p119 = scmp.ne.s32.totalorder %s114, %s116
      %p120 = scmp.eq.s32.totalorder %s24, 0
      %p121 = por %p119, %p120
      %p122 = scmp.ne.s32.totalorder %s114, %s116
      %p123 = scmp.eq.s32.totalorder %s29, 1
      %p124 = por %p122, %p123
      %p125 = scmp.ne.s32.totalorder %s116, %s117
      %p126 = scmp.eq.s32.totalorder %s29, 0
      %p127 = por %p125, %p126
      %p128 = scmp.ne.s32.totalorder %s116, %s117
      %p129 = scmp.eq.s32.totalorder %s30, 1
      %p130 = por %p128, %p129
      %p132 = scmp.ne.s32.totalorder %s117, %s131
      %p133 = scmp.eq.s32.totalorder %s30, 0
      %p134 = por %p132, %p133
      %s136 = sadd.s32 %s135, 1
      %p139 = scmp.eq.s32.totalorder %s24, 1
      %p140 = scmp.ne.s32.totalorder %s135, %s137
      %p141 = scmp.eq.s32.totalorder %s24, 0
      %p142 = por %p140, %p141
      %p143 = scmp.ne.s32.totalorder %s135, %s137
      %p144 = scmp.eq.s32.totalorder %s29, 1
      %p145 = por %p143, %p144
      %p146 = scmp.ne.s32.totalorder %s137, %s138
      %p147 = scmp.eq.s32.totalorder %s29, 0
      %p148 = por %p146, %p147
      %p149 = scmp.ne.s32.totalorder %s137, %s138
      %p150 = scmp.eq.s32.totalorder %s30, 1
      %p151 = por %p149, %p150
      %p153 = scmp.ne.s32.totalorder %s138, %s152
      %p154 = scmp.eq.s32.totalorder %s30, 0
      %p155 = por %p153, %p154
      %s156 = ssub.s32 %s31, %s43
      %s157 = ssub.s32 %s32, %s39
      %s158 = sor.u32 %s156, %s157
      %p159 = scmp.eq.s32.totalorder %s158, 0
      %s161 = sadd.s32 %s160, 1
      %s162 = scalar_select %p159, %s160, %s161
      %p165 = pneg %p159
      %p166 = scmp.eq.s32.totalorder %s24, 1
      %p167 = por %p165, %p166
      %p168 = scmp.ne.s32.totalorder %s160, %s163
      %p169 = scmp.eq.s32.totalorder %s24, 0
      %p170 = por %p168, %p169
      %p171 = scmp.ne.s32.totalorder %s160, %s163
      %p172 = scmp.eq.s32.totalorder %s29, 1
      %p173 = por %p171, %p172
      %p174 = scmp.ne.s32.totalorder %s163, %s164
      %p175 = scmp.eq.s32.totalorder %s29, 0
      %p176 = por %p174, %p175
      %p177 = scmp.ne.s32.totalorder %s163, %s164
      %p178 = scmp.eq.s32.totalorder %s30, 1
      %p179 = por %p177, %p178
      %p181 = scmp.ne.s32.totalorder %s164, %s180
      %p182 = scmp.eq.s32.totalorder %s30, 0
      %p183 = por %p181, %p182
      %s184 = ssub.s32 %s31, %s43
      %s185 = ssub.s32 %s32, %s39
      %s186 = sor.u32 %s184, %s185
      %p187 = scmp.eq.s32.totalorder %s186, 0
      %s189 = sadd.s32 %s188, 1
      %s190 = scalar_select %p187, %s188, %s189
      %p193 = pneg %p187
      %p194 = scmp.eq.s32.totalorder %s24, 1
      %p195 = por %p193, %p194
      %p196 = scmp.ne.s32.totalorder %s188, %s191
      %p197 = scmp.eq.s32.totalorder %s24, 0
      %p198 = por %p196, %p197
      %p199 = scmp.ne.s32.totalorder %s188, %s191
      %p200 = scmp.eq.s32.totalorder %s29, 1
      %p201 = por %p199, %p200
      %p202 = scmp.ne.s32.totalorder %s191, %s192
      %p203 = scmp.eq.s32.totalorder %s29, 0
      %p204 = por %p202, %p203
      %p205 = scmp.ne.s32.totalorder %s191, %s192
      %p206 = scmp.eq.s32.totalorder %s30, 1
      %p207 = por %p205, %p206
      %p209 = scmp.ne.s32.totalorder %s192, %s208
      %p210 = scmp.eq.s32.totalorder %s30, 0
      %p211 = por %p209, %p210
      %s212 = ssub.s32 %s31, %s43
      %s213 = ssub.s32 %s32, %s39
      %s214 = sor.u32 %s212, %s213
      %p215 = scmp.eq.s32.totalorder %s214, 0
      %s217 = sadd.s32 %s216, 1
      %s218 = scalar_select %p215, %s216, %s217
      %p221 = pneg %p215
      %p222 = scmp.eq.s32.totalorder %s24, 1
      %p223 = por %p221, %p222
      %p224 = scmp.ne.s32.totalorder %s216, %s219
      %p225 = scmp.eq.s32.totalorder %s24, 0
      %p226 = por %p224, %p225
      %p227 = scmp.ne.s32.totalorder %s216, %s219
      %p228 = scmp.eq.s32.totalorder %s29, 1
      %p229 = por %p227, %p228
      %p230 = scmp.ne.s32.totalorder %s219, %s220
      %p231 = scmp.eq.s32.totalorder %s29, 0
      %p232 = por %p230, %p231
      %p233 = scmp.ne.s32.totalorder %s219, %s220
      %p234 = scmp.eq.s32.totalorder %s30, 1
      %p235 = por %p233, %p234
      %p237 = scmp.ne.s32.totalorder %s220, %s236
      %p238 = scmp.eq.s32.totalorder %s30, 0
      %p239 = por %p237, %p238
      %p240 = scmp.le.s32.totalorder 1, %s24
      %p241 = scmp.lt.s32.totalorder %s24, 3
      %p242 = pnand %p240, %p241
      %p243 = pneg %p242
      // Predicated region
      $region9: #{tpu_custom_call.1} parent=5 // pred_check
        _
      $region10: #{tpu_custom_call.1} parent=5 // pred_check_branch
        %245 = sbr.rel (%p242) target = $region12
      $region11: #{tpu_custom_call.1} parent=5 // pred_region
        %s246 = ssub.s32 %s24, 1
        // Predicated region
        $region13: #{tpu_custom_call.1} parent=11 // pred_check
          %p247 = pneg %p85
        $region14: #{tpu_custom_call.1} parent=11 // pred_check_branch
          %249 = sbr.rel (%p247) target = $region16
        $region15: #{tpu_custom_call.1} parent=11 // pred_region
          %251 = vsyncadd [#allocation6], 0
          %s253 = sshll.u32 %s1, 4
          %s254 = int_to_ptr.hbm [resolvable:$true] %s253
          %s255 = sshll.u32 [#allocation5], 4
          %s256 = int_to_ptr.vmem [resolvable:$true] %s255
          %258 = dma.hbm_to_vmem [thread:$0]  %s254, 16, %s256, [#allocation6]
        $region16: #{tpu_custom_call.1} parent=11 // pred_fallthru
          _
        // Predicated region
        $region17: #{tpu_custom_call.1} parent=11 // pred_check
          %p259 = pneg %p106
        $region18: #{tpu_custom_call.1} parent=11 // pred_check_branch
          %261 = sbr.rel (%p259) target = $region20
        $region19: #{tpu_custom_call.1} parent=11 // pred_region
          _
        $region20: #{tpu_custom_call.1} parent=11 // pred_fallthru
          _
        // Predicated region
        $region21: #{tpu_custom_call.1} parent=11 // pred_check
          %p262 = pneg %p127
        $region22: #{tpu_custom_call.1} parent=11 // pred_check_branch
          %264 = sbr.rel (%p262) target = $region24
        $region23: #{tpu_custom_call.1} parent=11 // pred_region
          %266 = vsyncadd [#allocation6], 0
          %s267 = sshll.u32 %s3, 4
          %s268 = int_to_ptr.hbm [resolvable:$true] %s267
          %s269 = sshll.u32 [#allocation7], 4
          %s270 = int_to_ptr.vmem [resolvable:$true] %s269
          %275 = dma.hbm_to_vmem [thread:$0]  %s268, 256, %s270, [#allocation6], 64, 64, 4
        $region24: #{tpu_custom_call.1} parent=11 // pred_fallthru
          _
        // Predicated region
        $region25: #{tpu_custom_call.1} parent=11 // pred_check
          %p276 = pneg %p148
        $region26: #{tpu_custom_call.1} parent=11 // pred_check_branch
          %278 = sbr.rel (%p276) target = $region28
        $region27: #{tpu_custom_call.1} parent=11 // pred_region
          _
        $region28: #{tpu_custom_call.1} parent=11 // pred_fallthru
          _
      $region12: #{tpu_custom_call.1} parent=5 // pred_fallthru
        _
      %p279 = scmp.lt.s32.totalorder %s24, 2
      // Predicated region
      $region29: #{tpu_custom_call.1} parent=5 // pred_check
        %p280 = pneg %p279
      $region30: #{tpu_custom_call.1} parent=5 // pred_check_branch
        %282 = sbr.rel (%p280) target = $region32
      $region31: #{tpu_custom_call.1} parent=5 // pred_region
        // Predicated region
        $region33: #{tpu_custom_call.1} parent=31 // pred_check
          %p283 = pneg %p58
        $region34: #{tpu_custom_call.1} parent=31 // pred_check_branch
          %285 = sbr.rel (%p283) target = $region36
        $region35: #{tpu_custom_call.1} parent=31 // pred_region
          %s286 = sand.u32 %s48, 1
          %s287 = scalar_lea.sflag [#allocation3], %s286
          %s288 = sand.u32 %s48, 1
          %s289 = smul.addr %s288, 8
          %s290 = scalar_lea.vmem [#allocation2], %s289
          %292 = vsyncadd %s287, 0
          %s293 = sadd.s32 %s32, %s31
          %s294 = smul.addr %s293, 8
          %s295 = scalar_lea.hbm %s0, %s294
          %s297 = sshll.u32 %s295, 4
          %s298 = int_to_ptr.hbm [resolvable:$true] %s297
          %s299 = sshll.u32 %s290, 4
          %s300 = int_to_ptr.vmem [resolvable:$true] %s299
          %302 = dma.hbm_to_vmem [thread:$0]  %s298, 128, %s300, %s287
        $region36: #{tpu_custom_call.1} parent=31 // pred_fallthru
          _
      $region32: #{tpu_custom_call.1} parent=5 // pred_fallthru
        _
      %p303 = scmp.le.s32.totalorder 1, %s24
      %p304 = scmp.lt.s32.totalorder %s24, 3
      %p305 = pnand %p303, %p304
      %p306 = pneg %p305
      // Predicated region
      $region37: #{tpu_custom_call.1} parent=5 // pred_check
        _
      $region38: #{tpu_custom_call.1} parent=5 // pred_check_branch
        %308 = sbr.rel (%p305) target = $region40
      $region39: #{tpu_custom_call.1} parent=5 // pred_region
        %s309 = ssub.s32 %s24, 1
        %s310 = sand.u32 %s51, 1
        %s311 = scalar_lea.sflag [#allocation3], %s310
        %s312 = sand.u32 %s51, 1
        %s313 = smul.addr %s312, 8
        %s314 = scalar_lea.vmem [#allocation2], %s313
        // Predicated region
        $region41: #{tpu_custom_call.1} parent=39 // pred_check
          %p315 = pneg %p64
        $region42: #{tpu_custom_call.1} parent=39 // pred_check_branch
          %317 = sbr.rel (%p315) target = $region44
        $region43: #{tpu_custom_call.1} parent=39 // pred_region
          %319 = dma.done %s311, 128
        $region44: #{tpu_custom_call.1} parent=39 // pred_fallthru
          _
        // Predicated region
        $region45: #{tpu_custom_call.1} parent=39 // pred_check
          %p320 = pneg %p85
        $region46: #{tpu_custom_call.1} parent=39 // pred_check_branch
          %322 = sbr.rel (%p320) target = $region48
        $region47: #{tpu_custom_call.1} parent=39 // pred_region
          %324 = dma.done [#allocation6], 16
        $region48: #{tpu_custom_call.1} parent=39 // pred_fallthru
          _
        // Predicated region
        $region49: #{tpu_custom_call.1} parent=39 // pred_check
          %p325 = pneg %p127
        $region50: #{tpu_custom_call.1} parent=39 // pred_check_branch
          %327 = sbr.rel (%p325) target = $region52
        $region51: #{tpu_custom_call.1} parent=39 // pred_region
          %329 = dma.done [#allocation6], 256
        $region52: #{tpu_custom_call.1} parent=39 // pred_fallthru
          _
        %s330 = sand.u32 %s51, 1
        %s331 = scalar_lea.sflag [#allocation3], %s330
        %s332 = sand.u32 %s51, 1
        %s333 = smul.addr %s332, 8
        %s334 = scalar_lea.vmem [#allocation2], %s333
        %p335 = pneg %p64
        %p336 = pneg %p61
        %p337 = pneg %p85
        %p338 = pneg %p82
        %p339 = pneg %p106
        %p340 = pneg %p103
        %p341 = pneg %p127
        %p342 = pneg %p124
        %p343 = pneg %p148
        %p344 = pneg %p145
        %p345 = pneg %p176
        %p346 = pneg %p173
        %s347 = sand.u32 %s163, 1
        %s348 = scalar_lea.sflag [#allocation4], %s347
        %s349 = sand.u32 %s163, 1
        %s350 = smul.addr %s349, 16
        %s351 = scalar_lea.vmem [#allocation8], %s350
        %p352 = pneg %p204
        %p353 = pneg %p201
        %s354 = sand.u32 %s29, 1
        %s355 = scalar_lea.sflag [#allocation10], %s354
        %s356 = sand.u32 %s191, 1
        %s357 = smul.addr %s356, 16
        %s358 = scalar_lea.vmem [#allocation9], %s357
        %p359 = pneg %p232
        %p360 = pneg %p229
        %s361 = sand.u32 %s29, 1
        %s362 = scalar_lea.sflag [#allocation10], %s361
        %s363 = sand.u32 %s219, 1
        %s364 = smul.addr %s363, 16
        %s365 = scalar_lea.vmem [#allocation11], %s364
        %v367 = vld [vmem:[%s314] sm:$0xff]
        %v368 = vld [vmem:[#allocation5] sm:$0x1]
        %v369 = vld [vmem:[%s2] sm:$0x1]
        %vm370 = vcmask 261120
        %v371 = vsel %vm370, %v367, 0.0
        %372 = vadd.xlane.f32.xlu0 %v371
        %v373 = vpop.xlane.xlu0 %372
        %v374 = vrcp.pop 32.0
        %v375 = vmul.f32 32.0, %v374
        %v376 = vsub.f32 1.0, %v375
        %v377 = vmul.f32 %v374, %v376
        %v378 = vadd.f32 %v374, %v377
        %vm379 = vweird.f32 %v374
        %v380 = vsel %vm379, %v374, %v378
        %v381 = vmul.f32 %v373, %v380
        %v382 = vmul.f32 %v367, %v367
        %v383 = vsel %vm370, %v382, 0.0
        %384 = vadd.xlane.f32.xlu0 %v383
        %v385 = vpop.xlane.xlu0 %384
        %v386 = vmul.f32 %v385, %v380
        %v387 = vmul.f32 %v381, %v381
        %v388 = vsub.f32 %v386, %v387
        %v389 = vmax.f32 %v388, 0.0
        %v390 = vadd.f32 %v389, 1e-05
        %v391 = vrsqrt.pop %v390
        %v392 = vmul.f32 %v391, %v390
        %v393 = vmul.f32 %v392, %v391
        %v394 = vmul.f32 0.5, %v393
        %v395 = vsub.f32 1.5, %v394
        %v396 = vmul.f32 %v391, %v395
        %vm397 = vweird.f32 %v390
        %vm398 = vweird.f32 %v391
        %vm399 = vmor %vm397, %vm398
        %v400 = vsel %vm399, %v391, %v396
        %v401 = vsub.f32 %v367, %v381
        %v402 = vmul.f32 %v401, %v400
        %v404 = vperm.slane %v368, 0
        %v406 = vmul.f32 %v402, %v404
        %v408 = vperm.slane %v369, 0
        %v410 = vadd.f32 %v406, %v408
        %v411 = vpack.c.bf16 %v410, %v410
        %v412 = vld [vmem:[#allocation7] sm:$0xf]
        %v413 = vld [vmem:[#allocation7 + $0x4] sm:$0xf]
        %v414 = vld [vmem:[#allocation7 + $0x8] sm:$0xf]
        %v415 = vld [vmem:[#allocation7 + $0xc] sm:$0xf]
        %v416 = vld [vmem:[%s4] sm:$0x1]
        %v418 = vperm.slane %v416, 0
        %v424 = vunpack.c.l.b16 %v412
        %v425 = vunpack.c.l.b16 %v413
        %v426 = vunpack.c.l.b16 %v414
        %v427 = vunpack.c.l.b16 %v415
        %v428 = vpack.c.b16 %v425, %v424
        %v429 = vpack.c.b16 %v427, %v426
        %v433 = vsel %vm370, %v411, 0
        %435 = vmatpush.bf16.msra.mxu0 0
        %436 = vmatpush.bf16.msra.mxu0 0
        %437 = vmatpush.bf16.msra.mxu0 0
        %438 = vmatpush.bf16.msra.mxu0 0
        %439 = vmatpush.bf16.msra.mxu0 0
        %440 = vmatpush.bf16.msra.mxu0 0
        %441 = vmatpush.bf16.msra.mxu0 %v429
        %442 = vmatpush.bf16.msra.mxu0 %v428
        %443 = vmatmul.bf16.gmra.mxu0 %v433
        %v444 = vpop.f32.mrf.mxu0
        %v445 = vadd.f32 %v418, %v444
        %v446 = vpop.f32.mrf.mxu0
        %447 = vdwg.mxu0
        %v448 = vmul.f32 %v445, 0.35355338
        %450 = vrot.lane.b32.xlu0 %v448, 120
        %v451 = vpop.permute.xlu0 %450
        %453 = vrot.lane.b32.xlu0 %v448, 112
        %v454 = vpop.permute.xlu0 %453
        %456 = vrot.lane.b32.xlu0 %v448, 104
        %v457 = vpop.permute.xlu0 %456
        %v459 = vrot.slane %v454, 4
        %vm460 = vcmask 1047556
        %v461 = vsel %vm460, %v459, %v448
        %v462 = vrot.slane %v448, 4
        %v463 = vsel %vm460, %v454, %v462
        %v465 = vunpack.c.l.s4 1983009808
        %v466 = vunpack.c.0.s8 %v465
        %v467 = vperm.slane %v461, %v466
        %v469 = vunpack.c.l.s4 1983009808
        %v470 = vunpack.c.0.s8 %v469
        %v471 = vperm.slane %v463, %v470
        %v472 = vrot.slane %v457, 4
        %v473 = vsel %vm460, %v472, %v451
        %v474 = vrot.slane %v451, 4
        %v475 = vsel %vm460, %v457, %v474
        %v477 = vunpack.c.l.s4 1983009808
        %v478 = vunpack.c.0.s8 %v477
        %v479 = vperm.slane %v473, %v478
        %v481 = vunpack.c.l.s4 1983009808
        %v482 = vunpack.c.0.s8 %v481
        %v483 = vperm.slane %v475, %v482
        %v484 = vrot.slane %v479, 4
        %v485 = vsel %vm460, %v484, %v467
        %v486 = vrot.slane %v467, 4
        %v487 = vsel %vm460, %v479, %v486
        %v489 = vunpack.c.l.s4 1934713408
        %v490 = vunpack.c.0.s8 %v489
        %v491 = vperm.slane %v485, %v490
        %v493 = vunpack.c.l.s4 1934713408
        %v494 = vunpack.c.0.s8 %v493
        %v495 = vperm.slane %v487, %v494
        %v496 = vrot.slane %v483, 4
        %v497 = vsel %vm460, %v496, %v471
        %v498 = vrot.slane %v471, 4
        %v499 = vsel %vm460, %v483, %v498
        %v501 = vunpack.c.l.s4 1934713408
        %v502 = vunpack.c.0.s8 %v501
        %v503 = vperm.slane %v497, %v502
        %v505 = vunpack.c.l.s4 1934713408
        %v506 = vunpack.c.0.s8 %v505
        %v507 = vperm.slane %v499, %v506
        %v508 = vrot.slane %v491, 4
        %v509 = vsel %vm460, 0.0, %v508
        %v510 = vrot.slane %v495, 4
        %v511 = vsel %vm460, 0.0, %v510
        %v512 = vrot.slane %v503, 4
        %v513 = vsel %vm460, 0.0, %v512
        %v514 = vrot.slane %v507, 4
        %v515 = vsel %vm460, 0.0, %v514
        %v516 = vsel %vm460, %v510, %v491
        %v518 = vunpack.c.l.s4 1983009808
        %v519 = vunpack.c.0.s8 %v518
        %v520 = vperm.slane %v516, %v519
        %v521 = vrot.slane %v511, 4
        %v522 = vsel %vm460, %v521, %v509
        %v524 = vunpack.c.l.s4 1983009808
        %v525 = vunpack.c.0.s8 %v524
        %v526 = vperm.slane %v522, %v525
        %v527 = vsel %vm460, %v514, %v503
        %v529 = vunpack.c.l.s4 1983009808
        %v530 = vunpack.c.0.s8 %v529
        %v531 = vperm.slane %v527, %v530
        %v532 = vrot.slane %v515, 4
        %v533 = vsel %vm460, %v532, %v513
        %v535 = vunpack.c.l.s4 1983009808
        %v536 = vunpack.c.0.s8 %v535
        %v537 = vperm.slane %v533, %v536
        %v538 = vrot.slane %v526, 4
        %v539 = vsel %vm460, %v538, %v520
        %v540 = vrot.slane %v520, 4
        %v541 = vsel %vm460, %v526, %v540
        %v543 = vunpack.c.l.s4 1934713408
        %v544 = vunpack.c.0.s8 %v543
        %v545 = vperm.slane %v539, %v544
        %v547 = vunpack.c.l.s4 1934713408
        %v548 = vunpack.c.0.s8 %v547
        %v549 = vperm.slane %v541, %v548
        %v550 = vrot.slane %v537, 4
        %v551 = vsel %vm460, %v550, %v531
        %v552 = vrot.slane %v531, 4
        %v553 = vsel %vm460, %v537, %v552
        %v555 = vunpack.c.l.s4 1934713408
        %v556 = vunpack.c.0.s8 %v555
        %v557 = vperm.slane %v551, %v556
        %v559 = vunpack.c.l.s4 1934713408
        %v560 = vunpack.c.0.s8 %v559
        %v561 = vperm.slane %v553, %v560
        %v562 = vrot.slane %v557, 4
        %v563 = vsel %vm460, %v562, %v545
        %v564 = vrot.slane %v545, 4
        %v565 = vsel %vm460, %v557, %v564
        %v566 = vrot.slane %v561, 4
        %v567 = vsel %vm460, %v566, %v549
        %v568 = vrot.slane %v549, 4
        %v569 = vsel %vm460, %v561, %v568
        %v570 = vpack.c.bf16 %v563, %v563
        %v571 = vpack.c.bf16 %v565, %v565
        %v572 = vpack.c.bf16 %v567, %v567
        %v573 = vpack.c.bf16 %v569, %v569
        %vm574 = vcmask 60416
        %575 = vst.msk [vmem:[%s351] sm:$0xf] %vm574, %v570
        %576 = vst.msk [vmem:[%s351 + $0x4] sm:$0xf] %vm574, %v571
        %577 = vst.msk [vmem:[%s351 + $0x8] sm:$0xf] %vm574, %v572
        %578 = vst.msk [vmem:[%s351 + $0xc] sm:$0xf] %vm574, %v573
        %580 = vrot.lane.b32.xlu0 %v445, 120
        %v581 = vpop.permute.xlu0 %580
        %582 = vrot.lane.b32.xlu0 %v445, 112
        %v583 = vpop.permute.xlu0 %582
        %584 = vrot.lane.b32.xlu0 %v445, 104
        %v585 = vpop.permute.xlu0 %584
        %586 = vrot.lane.b32.xlu0 %v445, 96
        %v587 = vpop.permute.xlu0 %586
        %588 = vrot.lane.b32.xlu0 %v581, 96
        %v589 = vpop.permute.xlu0 %588
        %590 = vrot.lane.b32.xlu0 %v583, 96
        %v591 = vpop.permute.xlu0 %590
        %592 = vrot.lane.b32.xlu0 %v585, 96
        %v593 = vpop.permute.xlu0 %592
        %v598 = vrot.slane %v591, 4
        %v599 = vsel %vm460, %v598, %v587
        %v600 = vrot.slane %v587, 4
        %v601 = vsel %vm460, %v591, %v600
        %v603 = vunpack.c.l.s4 1983009808
        %v604 = vunpack.c.0.s8 %v603
        %v605 = vperm.slane %v599, %v604
        %v607 = vunpack.c.l.s4 1983009808
        %v608 = vunpack.c.0.s8 %v607
        %v609 = vperm.slane %v601, %v608
        %v610 = vrot.slane %v593, 4
        %v611 = vsel %vm460, %v610, %v589
        %v612 = vrot.slane %v589, 4
        %v613 = vsel %vm460, %v593, %v612
        %v615 = vunpack.c.l.s4 1983009808
        %v616 = vunpack.c.0.s8 %v615
        %v617 = vperm.slane %v611, %v616
        %v619 = vunpack.c.l.s4 1983009808
        %v620 = vunpack.c.0.s8 %v619
        %v621 = vperm.slane %v613, %v620
        %v622 = vrot.slane %v617, 4
        %v623 = vsel %vm460, %v622, %v605
        %v624 = vrot.slane %v605, 4
        %v625 = vsel %vm460, %v617, %v624
        %v627 = vunpack.c.l.s4 1934713408
        %v628 = vunpack.c.0.s8 %v627
        %v629 = vperm.slane %v623, %v628
        %v631 = vunpack.c.l.s4 1934713408
        %v632 = vunpack.c.0.s8 %v631
        %v633 = vperm.slane %v625, %v632
        %v634 = vrot.slane %v621, 4
        %v635 = vsel %vm460, %v634, %v609
        %v636 = vrot.slane %v609, 4
        %v637 = vsel %vm460, %v621, %v636
        %v639 = vunpack.c.l.s4 1934713408
        %v640 = vunpack.c.0.s8 %v639
        %v641 = vperm.slane %v635, %v640
        %v643 = vunpack.c.l.s4 1934713408
        %v644 = vunpack.c.0.s8 %v643
        %v645 = vperm.slane %v637, %v644
        %v646 = vrot.slane %v629, 4
        %v647 = vsel %vm460, 0.0, %v646
        %v648 = vrot.slane %v633, 4
        %v649 = vsel %vm460, 0.0, %v648
        %v650 = vrot.slane %v641, 4
        %v651 = vsel %vm460, 0.0, %v650
        %v652 = vrot.slane %v645, 4
        %v653 = vsel %vm460, 0.0, %v652
        %v654 = vsel %vm460, %v648, %v629
        %v656 = vunpack.c.l.s4 1983009808
        %v657 = vunpack.c.0.s8 %v656
        %v658 = vperm.slane %v654, %v657
        %v659 = vrot.slane %v649, 4
        %v660 = vsel %vm460, %v659, %v647
        %v662 = vunpack.c.l.s4 1983009808
        %v663 = vunpack.c.0.s8 %v662
        %v664 = vperm.slane %v660, %v663
        %v665 = vsel %vm460, %v652, %v641
        %v667 = vunpack.c.l.s4 1983009808
        %v668 = vunpack.c.0.s8 %v667
        %v669 = vperm.slane %v665, %v668
        %v670 = vrot.slane %v653, 4
        %v671 = vsel %vm460, %v670, %v651
        %v673 = vunpack.c.l.s4 1983009808
        %v674 = vunpack.c.0.s8 %v673
        %v675 = vperm.slane %v671, %v674
        %v676 = vrot.slane %v664, 4
        %v677 = vsel %vm460, %v676, %v658
        %v678 = vrot.slane %v658, 4
        %v679 = vsel %vm460, %v664, %v678
        %v681 = vunpack.c.l.s4 1934713408
        %v682 = vunpack.c.0.s8 %v681
        %v683 = vperm.slane %v677, %v682
        %v685 = vunpack.c.l.s4 1934713408
        %v686 = vunpack.c.0.s8 %v685
        %v687 = vperm.slane %v679, %v686
        %v688 = vrot.slane %v675, 4
        %v689 = vsel %vm460, %v688, %v669
        %v690 = vrot.slane %v669, 4
        %v691 = vsel %vm460, %v675, %v690
        %v693 = vunpack.c.l.s4 1934713408
        %v694 = vunpack.c.0.s8 %v693
        %v695 = vperm.slane %v689, %v694
        %v697 = vunpack.c.l.s4 1934713408
        %v698 = vunpack.c.0.s8 %v697
        %v699 = vperm.slane %v691, %v698
        %v700 = vrot.slane %v695, 4
        %v701 = vsel %vm460, %v700, %v683
        %v702 = vrot.slane %v683, 4
        %v703 = vsel %vm460, %v695, %v702
        %v704 = vrot.slane %v699, 4
        %v705 = vsel %vm460, %v704, %v687
        %v706 = vrot.slane %v687, 4
        %v707 = vsel %vm460, %v699, %v706
        %v708 = vpack.c.bf16 %v701, %v701
        %v709 = vpack.c.bf16 %v703, %v703
        %v710 = vpack.c.bf16 %v705, %v705
        %v711 = vpack.c.bf16 %v707, %v707
        %712 = vst.msk [vmem:[%s358] sm:$0xf] %vm574, %v708
        %713 = vst.msk [vmem:[%s358 + $0x4] sm:$0xf] %vm574, %v709
        %714 = vst.msk [vmem:[%s358 + $0x8] sm:$0xf] %vm574, %v710
        %715 = vst.msk [vmem:[%s358 + $0xc] sm:$0xf] %vm574, %v711
        %716 = vrot.lane.b32.xlu0 %v445, 64
        %v717 = vpop.permute.xlu0 %716
        %718 = vrot.lane.b32.xlu0 %v581, 64
        %v719 = vpop.permute.xlu0 %718
        %720 = vrot.lane.b32.xlu0 %v583, 64
        %v721 = vpop.permute.xlu0 %720
        %722 = vrot.lane.b32.xlu0 %v585, 64
        %v723 = vpop.permute.xlu0 %722
        %v728 = vrot.slane %v721, 4
        %v729 = vsel %vm460, %v728, %v717
        %v730 = vrot.slane %v717, 4
        %v731 = vsel %vm460, %v721, %v730
        %v733 = vunpack.c.l.s4 1983009808
        %v734 = vunpack.c.0.s8 %v733
        %v735 = vperm.slane %v729, %v734
        %v737 = vunpack.c.l.s4 1983009808
        %v738 = vunpack.c.0.s8 %v737
        %v739 = vperm.slane %v731, %v738
        %v740 = vrot.slane %v723, 4
        %v741 = vsel %vm460, %v740, %v719
        %v742 = vrot.slane %v719, 4
        %v743 = vsel %vm460, %v723, %v742
        %v745 = vunpack.c.l.s4 1983009808
        %v746 = vunpack.c.0.s8 %v745
        %v747 = vperm.slane %v741, %v746
        %v749 = vunpack.c.l.s4 1983009808
        %v750 = vunpack.c.0.s8 %v749
        %v751 = vperm.slane %v743, %v750
        %v752 = vrot.slane %v747, 4
        %v753 = vsel %vm460, %v752, %v735
        %v754 = vrot.slane %v735, 4
        %v755 = vsel %vm460, %v747, %v754
        %v757 = vunpack.c.l.s4 1934713408
        %v758 = vunpack.c.0.s8 %v757
        %v759 = vperm.slane %v753, %v758
        %v761 = vunpack.c.l.s4 1934713408
        %v762 = vunpack.c.0.s8 %v761
        %v763 = vperm.slane %v755, %v762
        %v764 = vrot.slane %v751, 4
        %v765 = vsel %vm460, %v764, %v739
        %v766 = vrot.slane %v739, 4
        %v767 = vsel %vm460, %v751, %v766
        %v769 = vunpack.c.l.s4 1934713408
        %v770 = vunpack.c.0.s8 %v769
        %v771 = vperm.slane %v765, %v770
        %v773 = vunpack.c.l.s4 1934713408
        %v774 = vunpack.c.0.s8 %v773
        %v775 = vperm.slane %v767, %v774
        %v776 = vrot.slane %v759, 4
        %v777 = vsel %vm460, 0.0, %v776
        %v778 = vrot.slane %v763, 4
        %v779 = vsel %vm460, 0.0, %v778
        %v780 = vrot.slane %v771, 4
        %v781 = vsel %vm460, 0.0, %v780
        %v782 = vrot.slane %v775, 4
        %v783 = vsel %vm460, 0.0, %v782
        %v784 = vsel %vm460, %v778, %v759
        %v786 = vunpack.c.l.s4 1983009808
        %v787 = vunpack.c.0.s8 %v786
        %v788 = vperm.slane %v784, %v787
        %v789 = vrot.slane %v779, 4
        %v790 = vsel %vm460, %v789, %v777
        %v792 = vunpack.c.l.s4 1983009808
        %v793 = vunpack.c.0.s8 %v792
        %v794 = vperm.slane %v790, %v793
        %v795 = vsel %vm460, %v782, %v771
        %v797 = vunpack.c.l.s4 1983009808
        %v798 = vunpack.c.0.s8 %v797
        %v799 = vperm.slane %v795, %v798
        %v800 = vrot.slane %v783, 4
        %v801 = vsel %vm460, %v800, %v781
        %v803 = vunpack.c.l.s4 1983009808
        %v804 = vunpack.c.0.s8 %v803
        %v805 = vperm.slane %v801, %v804
        %v806 = vrot.slane %v794, 4
        %v807 = vsel %vm460, %v806, %v788
        %v808 = vrot.slane %v788, 4
        %v809 = vsel %vm460, %v794, %v808
        %v811 = vunpack.c.l.s4 1934713408
        %v812 = vunpack.c.0.s8 %v811
        %v813 = vperm.slane %v807, %v812
        %v815 = vunpack.c.l.s4 1934713408
        %v816 = vunpack.c.0.s8 %v815
        %v817 = vperm.slane %v809, %v816
        %v818 = vrot.slane %v805, 4
        %v819 = vsel %vm460, %v818, %v799
        %v820 = vrot.slane %v799, 4
        %v821 = vsel %vm460, %v805, %v820
        %v823 = vunpack.c.l.s4 1934713408
        %v824 = vunpack.c.0.s8 %v823
        %v825 = vperm.slane %v819, %v824
        %v827 = vunpack.c.l.s4 1934713408
        %v828 = vunpack.c.0.s8 %v827
        %v829 = vperm.slane %v821, %v828
        %v830 = vrot.slane %v825, 4
        %v831 = vsel %vm460, %v830, %v813
        %v832 = vrot.slane %v813, 4
        %v833 = vsel %vm460, %v825, %v832
        %v834 = vrot.slane %v829, 4
        %v835 = vsel %vm460, %v834, %v817
        %v836 = vrot.slane %v817, 4
        %v837 = vsel %vm460, %v829, %v836
        %v838 = vpack.c.bf16 %v831, %v831
        %v839 = vpack.c.bf16 %v833, %v833
        %v840 = vpack.c.bf16 %v835, %v835
        %v841 = vpack.c.bf16 %v837, %v837
        %842 = vst.msk [vmem:[%s365] sm:$0xf] %vm574, %v838
        %843 = vst.msk [vmem:[%s365 + $0x4] sm:$0xf] %vm574, %v839
        %844 = vst.msk [vmem:[%s365 + $0x8] sm:$0xf] %vm574, %v840
        %845 = vst.msk [vmem:[%s365 + $0xc] sm:$0xf] %vm574, %v841
        %s846 = sand.u32 %s163, 1
        %s847 = scalar_lea.sflag [#allocation4], %s846
        %s848 = sand.u32 %s163, 1
        %s849 = smul.addr %s848, 16
        %s850 = scalar_lea.vmem [#allocation8], %s849
        %s851 = sand.u32 %s29, 1
        %s852 = scalar_lea.sflag [#allocation10], %s851
        %s853 = sand.u32 %s191, 1
        %s854 = smul.addr %s853, 16
        %s855 = scalar_lea.vmem [#allocation9], %s854
        %s856 = sand.u32 %s29, 1
        %s857 = scalar_lea.sflag [#allocation10], %s856
        %s858 = sand.u32 %s219, 1
        %s859 = smul.addr %s858, 16
        %s860 = scalar_lea.vmem [#allocation11], %s859
        // Predicated region
        $region53: #{tpu_custom_call.1} parent=39 // pred_check
          %p861 = pneg %p173
        $region54: #{tpu_custom_call.1} parent=39 // pred_check_branch
          %863 = sbr.rel (%p861) target = $region56
        $region55: #{tpu_custom_call.1} parent=39 // pred_region
          %865 = vsyncadd %s847, 0
          %s866 = smul.addr %s33, 4
          %s867 = sadd.s32 %s34, %s866
          %s868 = smul.addr %s867, 4
          %s869 = scalar_lea.hbm %s5, %s868
          %s870 = sshll.u32 %s850, 4
          %s871 = int_to_ptr.vmem [resolvable:$true] %s870
          %s872 = sshll.u32 %s869, 4
          %s873 = int_to_ptr.hbm [resolvable:$true] %s872
          %878 = dma.vmem_to_hbm [thread:$0]  %s871, 256, %s873, %s847, 64, 64, 4
        $region56: #{tpu_custom_call.1} parent=39 // pred_fallthru
          _
        // Predicated region
        $region57: #{tpu_custom_call.1} parent=39 // pred_check
          %p879 = pneg %p201
        $region58: #{tpu_custom_call.1} parent=39 // pred_check_branch
          %881 = sbr.rel (%p879) target = $region60
        $region59: #{tpu_custom_call.1} parent=39 // pred_region
          %883 = vsyncadd %s852, 0
          %s884 = smul.addr %s33, 4
          %s885 = sadd.s32 %s34, %s884
          %s886 = smul.addr %s885, 4
          %s887 = scalar_lea.hbm %s6, %s886
          %s888 = sshll.u32 %s855, 4
          %s889 = int_to_ptr.vmem [resolvable:$true] %s888
          %s890 = sshll.u32 %s887, 4
          %s891 = int_to_ptr.hbm [resolvable:$true] %s890
          %896 = dma.vmem_to_hbm [thread:$0]  %s889, 256, %s891, %s852, 64, 64, 4
        $region60: #{tpu_custom_call.1} parent=39 // pred_fallthru
          _
        // Predicated region
        $region61: #{tpu_custom_call.1} parent=39 // pred_check
          %p897 = pneg %p229
        $region62: #{tpu_custom_call.1} parent=39 // pred_check_branch
          %899 = sbr.rel (%p897) target = $region64
        $region63: #{tpu_custom_call.1} parent=39 // pred_region
          %901 = vsyncadd %s857, 0
          %s902 = smul.addr %s33, 4
          %s903 = sadd.s32 %s34, %s902
          %s904 = smul.addr %s903, 4
          %s905 = scalar_lea.hbm %s7, %s904
          %s906 = sshll.u32 %s860, 4
          %s907 = int_to_ptr.vmem [resolvable:$true] %s906
          %s908 = sshll.u32 %s905, 4
          %s909 = int_to_ptr.hbm [resolvable:$true] %s908
          %914 = dma.vmem_to_hbm [thread:$0]  %s907, 256, %s909, %s857, 64, 64, 4
        $region64: #{tpu_custom_call.1} parent=39 // pred_fallthru
          _
      $region40: #{tpu_custom_call.1} parent=5 // pred_fallthru
        _
      %p915 = scmp.le.s32.totalorder 2, %s24
      // Predicated region
      $region65: #{tpu_custom_call.1} parent=5 // pred_check
        %p916 = pneg %p915
      $region66: #{tpu_custom_call.1} parent=5 // pred_check_branch
        %918 = sbr.rel (%p916) target = $region68
      $region67: #{tpu_custom_call.1} parent=5 // pred_region
        %s919 = ssub.s32 %s24, 2
        // Predicated region
        $region69: #{tpu_custom_call.1} parent=67 // pred_check
          %p920 = pneg %p179
        $region70: #{tpu_custom_call.1} parent=67 // pred_check_branch
          %922 = sbr.rel (%p920) target = $region72
        $region71: #{tpu_custom_call.1} parent=67 // pred_region
          %s923 = sand.u32 %s164, 1
          %s924 = scalar_lea.sflag [#allocation4], %s923
          %s925 = sand.u32 %s164, 1
          %s926 = smul.addr %s925, 16
          %s927 = scalar_lea.vmem [#allocation8], %s926
          %929 = dma.done %s924, 256
        $region72: #{tpu_custom_call.1} parent=67 // pred_fallthru
          _
        // Predicated region
        $region73: #{tpu_custom_call.1} parent=67 // pred_check
          %p930 = pneg %p207
        $region74: #{tpu_custom_call.1} parent=67 // pred_check_branch
          %932 = sbr.rel (%p930) target = $region76
        $region75: #{tpu_custom_call.1} parent=67 // pred_region
          %s933 = sand.u32 %s30, 1
          %s934 = scalar_lea.sflag [#allocation10], %s933
          %s935 = sand.u32 %s192, 1
          %s936 = smul.addr %s935, 16
          %s937 = scalar_lea.vmem [#allocation9], %s936
          %939 = dma.done %s934, 256
        $region76: #{tpu_custom_call.1} parent=67 // pred_fallthru
          _
        // Predicated region
        $region77: #{tpu_custom_call.1} parent=67 // pred_check
          %p940 = pneg %p235
        $region78: #{tpu_custom_call.1} parent=67 // pred_check_branch
          %942 = sbr.rel (%p940) target = $region80
        $region79: #{tpu_custom_call.1} parent=67 // pred_region
          %s943 = sand.u32 %s30, 1
          %s944 = scalar_lea.sflag [#allocation10], %s943
          %s945 = sand.u32 %s220, 1
          %s946 = smul.addr %s945, 16
          %s947 = scalar_lea.vmem [#allocation11], %s946
          %949 = dma.done %s944, 256
        $region80: #{tpu_custom_call.1} parent=67 // pred_fallthru
          _
      $region68: #{tpu_custom_call.1} parent=5 // pred_fallthru
        _
    $region6: #{tpu_custom_call.1} parent=1 // loop_footer
      %s28 = sadd.s32 1, %s24
    $region7: #{tpu_custom_call.1} parent=1 // loop_footer_branch
      %23 = sbr.rel target = $region3
    $region8: #{tpu_custom_call.1} parent=1 // loop_exit
      _
    %950 = vsyncpa [#allocation3], 1
    %s951 = scalar_lea.sflag [#allocation3], 1
    %952 = vsyncpa %s951, 1
    %953 = vsyncpa [#allocation6], 1
    %954 = vsyncpa [#allocation4], 1
    %s955 = scalar_lea.sflag [#allocation4], 1
    %956 = vsyncpa %s955, 1
    %957 = vsyncpa [#allocation10], 1
    %s958 = scalar_lea.sflag [#allocation10], 1
    %959 = vsyncpa %s958, 1

</llo_original>
